<compile_context>
chip_gen: v5e
topology: v5e:2x2
jax: 0.10.0
libtpu: 0.0.40
codegen_flags: <defaults>
</compile_context>

<pallas_src>
import functools

import jax
import jax.numpy as jnp
from jax.experimental import pallas as pl
from jax.experimental.pallas import tpu as pltpu


def gnn_ring_kernel(x_ref, w1_ref, b1_ref, w2p_ref, b2p_ref, out_ref,
                    *, dot_dtype):
    bblk, n, in_dim = x_ref.shape
    h_dim = w1_ref.shape[1]

    # ---- node_encoder: Linear(IN,H) -> ReLU, batch-flattened (M = Bblk*N) --
    # (Bblk, N, IN) -> (Bblk*N, IN) only merges leading dims (N % 8 == 0,
    # last dim untouched), so it is layout-preserving / copy-free.
    x2d = x_ref[...].reshape(bblk * n, in_dim)
    h = jnp.dot(x2d.astype(dot_dtype), w1_ref[...].astype(dot_dtype),
                preferred_element_type=jnp.float32)
    h = jnp.maximum(h + b1_ref[...], 0.0)                       # (Bblk*N, H) f32

    # ---- ring aggregation (self + both neighbours) -------------------------
    # Roll ONLY along the per-graph node axis (axis=1 of the 3D view), never
    # the flattened B*N axis.  roll(+1) + roll(N-1) is symmetric, so it is
    # independent of the roll sign convention.  Rolls run on the XLU slot.
    # The 1/3 degree normalization is folded into w2p on the host.
    h3 = h.reshape(bblk, n, h_dim)
    neigh = pltpu.roll(h3, 1, axis=1) + pltpu.roll(h3, n - 1, axis=1)
    agg = (h3 + neigh).reshape(bblk * n, h_dim)                 # (Bblk*N, H)

    # ---- folded Linear(H,H): (encoder W2 @ propagator Wp) / 3, + bias, ReLU
    out = jnp.dot(agg.astype(dot_dtype), w2p_ref[...].astype(dot_dtype),
                  preferred_element_type=jnp.float32)
    out = jnp.maximum(out + b2p_ref[...], 0.0)
    out_ref[...] = out.reshape(bblk, n, h_dim).astype(out_ref.dtype)


def _default_grid_steps(batch):
    # v7x has 2 TensorCores per chip -> two "parallel" grid steps keep both
    # busy; single-TC chips (v5e/v6e) are fastest with one full-batch step.
    try:
        kind = jax.devices()[0].device_kind.lower()
    except Exception:
        return 1
    if "v7" in kind and batch % 2 == 0:
        return 2
    return 1


def net_forward(x_nodes, kparams, *, grid_steps=None, dot_dtype=jnp.float32):
    B, N, IN = x_nodes.shape
    H = kparams["w2p"].shape[1]
    if grid_steps is None:
        grid_steps = _default_grid_steps(B)
    assert B % grid_steps == 0
    bblk = B // grid_steps

    kernel = functools.partial(gnn_ring_kernel, dot_dtype=dot_dtype)

    # Scheduling hint for XLA around this tiny, launch-latency-dominated call.
    flops = 2 * B * N * (IN * H + H * H) + 3 * B * N * H
    bytes_accessed = 4 * (x_nodes.size + kparams["w1"].size + kparams["b1"].size
                          + kparams["w2p"].size + kparams["b2p"].size
                          + B * N * H)

    return pl.pallas_call(
        kernel,
        out_shape=jax.ShapeDtypeStruct((B, N, H), jnp.float32),
        grid=(grid_steps,),
        in_specs=[
            pl.BlockSpec((bblk, N, IN), lambda b: (b, 0, 0)),   # node features
            pl.BlockSpec((IN, H), lambda b: (0, 0)),            # W1
            pl.BlockSpec((1, H), lambda b: (0, 0)),             # b1
            pl.BlockSpec((H, H), lambda b: (0, 0)),             # (W2 @ Wp) / 3
            pl.BlockSpec((1, H), lambda b: (0, 0)),             # b2 @ Wp + bp
        ],
        out_specs=pl.BlockSpec((bblk, N, H), lambda b: (b, 0, 0)),
        compiler_params=pltpu.CompilerParams(
            dimension_semantics=("parallel",)),                 # v7x: 2 TCs split batch
        cost_estimate=pl.CostEstimate(flops=flops, transcendentals=0,
                                      bytes_accessed=bytes_accessed),
    )(x_nodes, kparams["w1"], kparams["b1"], kparams["w2p"], kparams["b2p"])


def make_params(key, in_dim, hidden):
    k1, k2, k3 = jax.random.split(key, 3)
    scale = 0.1
    return {
        "w1": scale * jax.random.normal(k1, (in_dim, hidden), jnp.float32),
        "b1": 0.01 * jnp.ones((1, hidden), jnp.float32),
        "w2": scale * jax.random.normal(k2, (hidden, hidden), jnp.float32),
        "b2": 0.01 * jnp.ones((1, hidden), jnp.float32),
        "wp": scale * jax.random.normal(k3, (hidden, hidden), jnp.float32),
        "bp": 0.01 * jnp.ones((1, hidden), jnp.float32),
    }


def fold_params(p):
    # No nonlinearity between the encoder's second Linear and the propagator's
    # Linear, the aggregation is linear with rowsum(A) == 1, and every node
    # has degree exactly 3 (ring + self-loop, N >= 3), so
    #   A @ (h W2 + b2) Wp + bp == (h + roll+1 + roll-1) @ (W2 Wp / 3)
    #                              + (b2 Wp + bp).
    # NOTE: this fold is only valid for row-normalized, constant-degree graphs.
    return {
        "w1": p["w1"],
        "b1": p["b1"],
        "w2p": (p["w2"] @ p["wp"]) / 3.0,
        "b2p": p["b2"] @ p["wp"] + p["bp"],
    }


def make_ring_adjacency(n):
    # Ring graph with self-loops, row-normalized (used only by the reference).
    eye = jnp.eye(n, dtype=jnp.float32)
    a = eye + jnp.roll(eye, 1, axis=1) + jnp.roll(eye, -1, axis=1)
    return a / jnp.sum(a, axis=1, keepdims=True)


def reference_forward(x_nodes, adj, p):
    hp = jax.lax.Precision.HIGHEST
    h = jnp.maximum(
        jnp.einsum("bni,ih->bnh", x_nodes, p["w1"], precision=hp) + p["b1"], 0.0)
    h = jnp.einsum("bnh,hk->bnk", h, p["w2"], precision=hp) + p["b2"]
    agg = jnp.einsum("nm,bmh->bnh", adj, h, precision=hp)
    return jnp.maximum(
        jnp.einsum("bnh,hk->bnk", agg, p["wp"], precision=hp) + p["bp"], 0.0)


if __name__ == "__main__":
    # B independent ring graphs, N nodes each, lane-dense hidden width.
    B, N, IN_DIM, HIDDEN = 4, 256, 16, 128

    key = jax.random.PRNGKey(0)
    kx, kp = jax.random.split(key)
    x_nodes = jax.random.normal(kx, (B, N, IN_DIM), jnp.float32)
    params = make_params(kp, IN_DIM, HIDDEN)
    kparams = fold_params(params)

    adj = make_ring_adjacency(N)   # dense adjacency exists only in the reference
    ref = reference_forward(x_nodes, adj, params)

    # f32 MXU path: tight check against the HIGHEST-precision reference.
    out_f32 = jax.block_until_ready(
        net_forward(x_nodes, kparams, dot_dtype=jnp.float32))
    assert out_f32.shape == (B, N, HIDDEN)
    assert jnp.allclose(out_f32, ref, atol=2e-3, rtol=2e-3), \
        float(jnp.max(jnp.abs(out_f32 - ref)))

    # bf16-operand / f32-accumulation production path: looser tolerance.
    out_bf16 = jax.block_until_ready(
        net_forward(x_nodes, kparams, dot_dtype=jnp.bfloat16))
    assert out_bf16.shape == (B, N, HIDDEN)
    assert jnp.allclose(out_bf16, ref, atol=3e-2, rtol=3e-2), \
        float(jnp.max(jnp.abs(out_bf16 - ref)))

    # TODO(synk): graph_encoder is a constructor arg but never used in
    # Net.forward, so it is intentionally not implemented.
    print("KERNEL_OK")
</pallas_src>

<mosaic_0001>
module attributes {stable_mosaic.version = 11 : i64} {
  func.func @gnn_ring_kernel(%arg0: i32, %arg1: memref<4x256x16xf32, #tpu.memory_space<vmem>>, %arg2: memref<16x128xf32, #tpu.memory_space<vmem>>, %arg3: memref<1x128xf32, #tpu.memory_space<vmem>>, %arg4: memref<128x128xf32, #tpu.memory_space<vmem>>, %arg5: memref<1x128xf32, #tpu.memory_space<vmem>>, %arg6: memref<4x256x128xf32, #tpu.memory_space<vmem>>) attributes {dimension_semantics = [#tpu.dimension_semantics<parallel>], iteration_bounds = array<i64: 1>, scalar_prefetch = 0 : i64, scratch_operands = 0 : i64, tpu.core_type = #tpu.core_type<tc>, window_params = [{transform_indices = @transform_0, window_bounds = array<i64: 4, 256, 16>}, {pipeline_mode = #tpu.pipeline_mode<synchronous>, transform_indices = @transform_1, window_bounds = array<i64: 16, 128>}, {pipeline_mode = #tpu.pipeline_mode<synchronous>, transform_indices = @transform_2, window_bounds = array<i64: 1, 128>}, {pipeline_mode = #tpu.pipeline_mode<synchronous>, transform_indices = @transform_3, window_bounds = array<i64: 128, 128>}, {pipeline_mode = #tpu.pipeline_mode<synchronous>, transform_indices = @transform_4, window_bounds = array<i64: 1, 128>}, {transform_indices = @transform_5, window_bounds = array<i64: 4, 256, 128>}]} {
    %c0 = arith.constant 0 : index
    %c0_0 = arith.constant 0 : index
    %c0_1 = arith.constant 0 : index
    %0 = vector.load %arg1[%c0, %c0_0, %c0_1] : memref<4x256x16xf32, #tpu.memory_space<vmem>>, vector<4x256x16xf32>
    %1 = vector.shape_cast %0 : vector<4x256x16xf32> to vector<1024x16xf32>
    %c0_2 = arith.constant 0 : index
    %c0_3 = arith.constant 0 : index
    %2 = vector.load %arg2[%c0_2, %c0_3] : memref<16x128xf32, #tpu.memory_space<vmem>>, vector<16x128xf32>
    %cst = arith.constant dense<0.000000e+00> : vector<1024x128xf32>
    %3 = tpu.matmul %1, %2, %cst {dimension_numbers = #tpu.dot_dimension_numbers<[1], [0], [0], [1], [0, 0, 1, 1], [], []>} : vector<1024x16xf32>, vector<16x128xf32>, vector<1024x128xf32> -> vector<1024x128xf32>
    %c0_4 = arith.constant 0 : index
    %c0_5 = arith.constant 0 : index
    %4 = vector.load %arg3[%c0_4, %c0_5] : memref<1x128xf32, #tpu.memory_space<vmem>>, vector<1x128xf32>
    %5 = vector.broadcast %4 : vector<1x128xf32> to vector<1024x128xf32>
    %6 = arith.addf %3, %5 : vector<1024x128xf32>
    %cst_6 = arith.constant 0.000000e+00 : f32
    %7 = vector.broadcast %cst_6 : f32 to vector<1024x128xf32>
    %8 = arith.maximumf %6, %7 : vector<1024x128xf32>
    %9 = vector.shape_cast %8 : vector<1024x128xf32> to vector<4x256x128xf32>
    %c1_i32 = arith.constant 1 : i32
    %10 = tpu.dynamic_rotate %9 by %c1_i32 dim 1 : vector<4x256x128xf32>, i32 -> vector<4x256x128xf32>
    %c255_i32 = arith.constant 255 : i32
    %11 = tpu.dynamic_rotate %9 by %c255_i32 dim 1 : vector<4x256x128xf32>, i32 -> vector<4x256x128xf32>
    %12 = arith.addf %10, %11 : vector<4x256x128xf32>
    %13 = arith.addf %9, %12 : vector<4x256x128xf32>
    %14 = vector.shape_cast %13 : vector<4x256x128xf32> to vector<1024x128xf32>
    %c0_7 = arith.constant 0 : index
    %c0_8 = arith.constant 0 : index
    %15 = vector.load %arg4[%c0_7, %c0_8] : memref<128x128xf32, #tpu.memory_space<vmem>>, vector<128x128xf32>
    %cst_9 = arith.constant dense<0.000000e+00> : vector<1024x128xf32>
    %16 = tpu.matmul %14, %15, %cst_9 {dimension_numbers = #tpu.dot_dimension_numbers<[1], [0], [0], [1], [0, 0, 1, 1], [], []>} : vector<1024x128xf32>, vector<128x128xf32>, vector<1024x128xf32> -> vector<1024x128xf32>
    %c0_10 = arith.constant 0 : index
    %c0_11 = arith.constant 0 : index
    %17 = vector.load %arg5[%c0_10, %c0_11] : memref<1x128xf32, #tpu.memory_space<vmem>>, vector<1x128xf32>
    %18 = vector.broadcast %17 : vector<1x128xf32> to vector<1024x128xf32>
    %19 = arith.addf %16, %18 : vector<1024x128xf32>
    %cst_12 = arith.constant 0.000000e+00 : f32
    %20 = vector.broadcast %cst_12 : f32 to vector<1024x128xf32>
    %21 = arith.maximumf %19, %20 : vector<1024x128xf32>
    %22 = vector.shape_cast %21 : vector<1024x128xf32> to vector<4x256x128xf32>
    %c0_13 = arith.constant 0 : index
    %c0_14 = arith.constant 0 : index
    %c0_15 = arith.constant 0 : index
    %23 = vector.load %arg6[%c0_13, %c0_14, %c0_15] : memref<4x256x128xf32, #tpu.memory_space<vmem>>, vector<4x256x128xf32>
    tpu.vector_store %arg6[%c0_13, %c0_14, %c0_15], %22 {strides = array<i32>} : memref<4x256x128xf32, #tpu.memory_space<vmem>>, vector<4x256x128xf32>,
    return
  }
  func.func @transform_0(%arg0: i32) -> (i32, i32, i32) {
    %c0_i32 = arith.constant 0 : i32
    %c0_i32_0 = arith.constant 0 : i32
    %c0_i32_1 = arith.constant 0 : i32
    return %arg0, %c0_i32, %c0_i32_0 : i32, i32, i32
  }
  func.func @transform_1(%arg0: i32) -> (i32, i32) {
    %c0_i32 = arith.constant 0 : i32
    %c0_i32_0 = arith.constant 0 : i32
    %c0_i32_1 = arith.constant 0 : i32
    return %c0_i32, %c0_i32_0 : i32, i32
  }
  func.func @transform_2(%arg0: i32) -> (i32, i32) {
    %c0_i32 = arith.constant 0 : i32
    %c0_i32_0 = arith.constant 0 : i32
    %c0_i32_1 = arith.constant 0 : i32
    return %c0_i32, %c0_i32_0 : i32, i32
  }
  func.func @transform_3(%arg0: i32) -> (i32, i32) {
    %c0_i32 = arith.constant 0 : i32
    %c0_i32_0 = arith.constant 0 : i32
    %c0_i32_1 = arith.constant 0 : i32
    return %c0_i32, %c0_i32_0 : i32, i32
  }
  func.func @transform_4(%arg0: i32) -> (i32, i32) {
    %c0_i32 = arith.constant 0 : i32
    %c0_i32_0 = arith.constant 0 : i32
    %c0_i32_1 = arith.constant 0 : i32
    return %c0_i32, %c0_i32_0 : i32, i32
  }
  func.func @transform_5(%arg0: i32) -> (i32, i32, i32) {
    %c0_i32 = arith.constant 0 : i32
    %c0_i32_0 = arith.constant 0 : i32
    %c0_i32_1 = arith.constant 0 : i32
    return %arg0, %c0_i32, %c0_i32_0 : i32, i32, i32
  }
}

</mosaic_0001>

<llo_original>
// kernel: tpu_custom_call.1
$region0: #{tpu_custom_call.1}
  #allocation0 [shape = 'u32[]', space=smem, size = 0x4, offset = 0x4, fixed_abs, tag = 'smem constant byte address 0x4 - core index']
  #allocation1 [shape = 'u32[72,128]{1,0:T(1,128)}', space=vmem, size = 0x9000, scoped, tag = 'internal scratch']
  %s0 = inlined_call_operand.vmem [shape: f32[4,256,16], index: 0, kind: input, shape index: {}]
  %s1 = inlined_call_operand.vmem [shape: f32[16,128], index: 1, kind: input, shape index: {}]
  %s2 = inlined_call_operand.vmem [shape: f32[1,128], index: 2, kind: input, shape index: {}]
  %s3 = inlined_call_operand.vmem [shape: f32[128,128], index: 3, kind: input, shape index: {}]
  %s4 = inlined_call_operand.vmem [shape: f32[1,128], index: 4, kind: input, shape index: {}]
  %s5 = inlined_call_operand.hbm [shape: f32[4,256,128], index: 5, kind: output, shape index: {}]
  %s6 = sld [smem:[#allocation0]]
  $region30: #{tpu_custom_call.1} parent=0
    _
  %s8 = ssub.s32 1, %s6
  %s9 = scalar_select 0, %s8, %s6
  $region1: #{tpu_custom_call.1} parent=0
    #allocation2 [shape = 'u8[524288]{0}', space=vmem, size = 0x80000, scoped, tag = 'output window, operand 0, single buffered']
    #allocation3 [shape = 's32[1]{0}', space=sflag, size = 0x4, scoped, tag = 'scoped memory for tpu_custom_call.1']
    %10 = vsyncpa [#allocation3], 0
    // Predicated region
    $region2: #{tpu_custom_call.1} parent=1 // pred_check
      _
    $region3: #{tpu_custom_call.1} parent=1 // pred_check_branch
      %12 = sbr.rel (0) target = $region5
    $region4: #{tpu_custom_call.1} parent=1 // pred_region
      _
    $region5: #{tpu_custom_call.1} parent=1 // pred_fallthru
      _
    // Predicated region
    $region6: #{tpu_custom_call.1} parent=1 // pred_check
      _
    $region7: #{tpu_custom_call.1} parent=1 // pred_check_branch
      %14 = sbr.rel (0) target = $region9
    $region8: #{tpu_custom_call.1} parent=1 // pred_region
      _
    $region9: #{tpu_custom_call.1} parent=1 // pred_fallthru
      _
    // Predicated region
    $region10: #{tpu_custom_call.1} parent=1 // pred_check
      _
    $region11: #{tpu_custom_call.1} parent=1 // pred_check_branch
      %16 = sbr.rel (0) target = $region13
    $region12: #{tpu_custom_call.1} parent=1 // pred_region
      _
    $region13: #{tpu_custom_call.1} parent=1 // pred_fallthru
      _
    // Predicated region
    $region14: #{tpu_custom_call.1} parent=1 // pred_check
      _
    $region15: #{tpu_custom_call.1} parent=1 // pred_check_branch
      %18 = sbr.rel (0) target = $region17
    $region16: #{tpu_custom_call.1} parent=1 // pred_region
      _
    $region17: #{tpu_custom_call.1} parent=1 // pred_fallthru
      _
    // Predicated region
    $region18: #{tpu_custom_call.1} parent=1 // pred_check
      _
    $region19: #{tpu_custom_call.1} parent=1 // pred_check_branch
      %20 = sbr.rel (0) target = $region21
    $region20: #{tpu_custom_call.1} parent=1 // pred_region
      _
    $region21: #{tpu_custom_call.1} parent=1 // pred_fallthru
      _
    %v21 = vld [vmem:[%s0] sm:$0xff]
    %v22 = vld [vmem:[%s0 + $0x8] sm:$0xff]
    %v23 = vld [vmem:[%s0 + $0x10] sm:$0xff]
    %v24 = vld [vmem:[%s0 + $0x18] sm:$0xff]
    %v25 = vld [vmem:[%s0 + $0x20] sm:$0xff]
    %v26 = vld [vmem:[%s0 + $0x28] sm:$0xff]
    %v27 = vld [vmem:[%s0 + $0x30] sm:$0xff]
    %v28 = vld [vmem:[%s0 + $0x38] sm:$0xff]
    %v29 = vld [vmem:[%s0 + $0x40] sm:$0xff]
    %v30 = vld [vmem:[%s0 + $0x48] sm:$0xff]
    %v31 = vld [vmem:[%s0 + $0x50] sm:$0xff]
    %v32 = vld [vmem:[%s0 + $0x58] sm:$0xff]
    %v33 = vld [vmem:[%s0 + $0x60] sm:$0xff]
    %v34 = vld [vmem:[%s0 + $0x68] sm:$0xff]
    %v35 = vld [vmem:[%s0 + $0x70] sm:$0xff]
    %v36 = vld [vmem:[%s0 + $0x78] sm:$0xff]
    %v37 = vld [vmem:[%s0 + $0x80] sm:$0xff]
    %v38 = vld [vmem:[%s0 + $0x88] sm:$0xff]
    %v39 = vld [vmem:[%s0 + $0x90] sm:$0xff]
    %v40 = vld [vmem:[%s0 + $0x98] sm:$0xff]
    %v41 = vld [vmem:[%s0 + $0xa0] sm:$0xff]
    %v42 = vld [vmem:[%s0 + $0xa8] sm:$0xff]
    %v43 = vld [vmem:[%s0 + $0xb0] sm:$0xff]
    %v44 = vld [vmem:[%s0 + $0xb8] sm:$0xff]
    %v45 = vld [vmem:[%s0 + $0xc0] sm:$0xff]
    %v46 = vld [vmem:[%s0 + $0xc8] sm:$0xff]
    %v47 = vld [vmem:[%s0 + $0xd0] sm:$0xff]
    %v48 = vld [vmem:[%s0 + $0xd8] sm:$0xff]
    %v49 = vld [vmem:[%s0 + $0xe0] sm:$0xff]
    %v50 = vld [vmem:[%s0 + $0xe8] sm:$0xff]
    %v51 = vld [vmem:[%s0 + $0xf0] sm:$0xff]
    %v52 = vld [vmem:[%s0 + $0xf8] sm:$0xff]
    %v53 = vld [vmem:[%s0 + $0x100] sm:$0xff]
    %v54 = vld [vmem:[%s0 + $0x108] sm:$0xff]
    %v55 = vld [vmem:[%s0 + $0x110] sm:$0xff]
    %v56 = vld [vmem:[%s0 + $0x118] sm:$0xff]
    %v57 = vld [vmem:[%s0 + $0x120] sm:$0xff]
    %v58 = vld [vmem:[%s0 + $0x128] sm:$0xff]
    %v59 = vld [vmem:[%s0 + $0x130] sm:$0xff]
    %v60 = vld [vmem:[%s0 + $0x138] sm:$0xff]
    %v61 = vld [vmem:[%s0 + $0x140] sm:$0xff]
    %v62 = vld [vmem:[%s0 + $0x148] sm:$0xff]
    %v63 = vld [vmem:[%s0 + $0x150] sm:$0xff]
    %v64 = vld [vmem:[%s0 + $0x158] sm:$0xff]
    %v65 = vld [vmem:[%s0 + $0x160] sm:$0xff]
    %v66 = vld [vmem:[%s0 + $0x168] sm:$0xff]
    %v67 = vld [vmem:[%s0 + $0x170] sm:$0xff]
    %v68 = vld [vmem:[%s0 + $0x178] sm:$0xff]
    %v69 = vld [vmem:[%s0 + $0x180] sm:$0xff]
    %v70 = vld [vmem:[%s0 + $0x188] sm:$0xff]
    %v71 = vld [vmem:[%s0 + $0x190] sm:$0xff]
    %v72 = vld [vmem:[%s0 + $0x198] sm:$0xff]
    %v73 = vld [vmem:[%s0 + $0x1a0] sm:$0xff]
    %v74 = vld [vmem:[%s0 + $0x1a8] sm:$0xff]
    %v75 = vld [vmem:[%s0 + $0x1b0] sm:$0xff]
    %v76 = vld [vmem:[%s0 + $0x1b8] sm:$0xff]
    %v77 = vld [vmem:[%s0 + $0x1c0] sm:$0xff]
    %v78 = vld [vmem:[%s0 + $0x1c8] sm:$0xff]
    %v79 = vld [vmem:[%s0 + $0x1d0] sm:$0xff]
    %v80 = vld [vmem:[%s0 + $0x1d8] sm:$0xff]
    %v81 = vld [vmem:[%s0 + $0x1e0] sm:$0xff]
    %v82 = vld [vmem:[%s0 + $0x1e8] sm:$0xff]
    %v83 = vld [vmem:[%s0 + $0x1f0] sm:$0xff]
    %v84 = vld [vmem:[%s0 + $0x1f8] sm:$0xff]
    %v85 = vld [vmem:[%s0 + $0x200] sm:$0xff]
    %v86 = vld [vmem:[%s0 + $0x208] sm:$0xff]
    %v87 = vld [vmem:[%s0 + $0x210] sm:$0xff]
    %v88 = vld [vmem:[%s0 + $0x218] sm:$0xff]
    %v89 = vld [vmem:[%s0 + $0x220] sm:$0xff]
    %v90 = vld [vmem:[%s0 + $0x228] sm:$0xff]
    %v91 = vld [vmem:[%s0 + $0x230] sm:$0xff]
    %v92 = vld [vmem:[%s0 + $0x238] sm:$0xff]
    %v93 = vld [vmem:[%s0 + $0x240] sm:$0xff]
    %v94 = vld [vmem:[%s0 + $0x248] sm:$0xff]
    %v95 = vld [vmem:[%s0 + $0x250] sm:$0xff]
    %v96 = vld [vmem:[%s0 + $0x258] sm:$0xff]
    %v97 = vld [vmem:[%s0 + $0x260] sm:$0xff]
    %v98 = vld [vmem:[%s0 + $0x268] sm:$0xff]
    %v99 = vld [vmem:[%s0 + $0x270] sm:$0xff]
    %v100 = vld [vmem:[%s0 + $0x278] sm:$0xff]
    %v101 = vld [vmem:[%s0 + $0x280] sm:$0xff]
    %v102 = vld [vmem:[%s0 + $0x288] sm:$0xff]
    %v103 = vld [vmem:[%s0 + $0x290] sm:$0xff]
    %v104 = vld [vmem:[%s0 + $0x298] sm:$0xff]
    %v105 = vld [vmem:[%s0 + $0x2a0] sm:$0xff]
    %v106 = vld [vmem:[%s0 + $0x2a8] sm:$0xff]
    %v107 = vld [vmem:[%s0 + $0x2b0] sm:$0xff]
    %v108 = vld [vmem:[%s0 + $0x2b8] sm:$0xff]
    %v109 = vld [vmem:[%s0 + $0x2c0] sm:$0xff]
    %v110 = vld [vmem:[%s0 + $0x2c8] sm:$0xff]
    %v111 = vld [vmem:[%s0 + $0x2d0] sm:$0xff]
    %v112 = vld [vmem:[%s0 + $0x2d8] sm:$0xff]
    %v113 = vld [vmem:[%s0 + $0x2e0] sm:$0xff]
    %v114 = vld [vmem:[%s0 + $0x2e8] sm:$0xff]
    %v115 = vld [vmem:[%s0 + $0x2f0] sm:$0xff]
    %v116 = vld [vmem:[%s0 + $0x2f8] sm:$0xff]
    %v117 = vld [vmem:[%s0 + $0x300] sm:$0xff]
    %v118 = vld [vmem:[%s0 + $0x308] sm:$0xff]
    %v119 = vld [vmem:[%s0 + $0x310] sm:$0xff]
    %v120 = vld [vmem:[%s0 + $0x318] sm:$0xff]
    %v121 = vld [vmem:[%s0 + $0x320] sm:$0xff]
    %v122 = vld [vmem:[%s0 + $0x328] sm:$0xff]
    %v123 = vld [vmem:[%s0 + $0x330] sm:$0xff]
    %v124 = vld [vmem:[%s0 + $0x338] sm:$0xff]
    %v125 = vld [vmem:[%s0 + $0x340] sm:$0xff]
    %v126 = vld [vmem:[%s0 + $0x348] sm:$0xff]
    %v127 = vld [vmem:[%s0 + $0x350] sm:$0xff]
    %v128 = vld [vmem:[%s0 + $0x358] sm:$0xff]
    %v129 = vld [vmem:[%s0 + $0x360] sm:$0xff]
    %v130 = vld [vmem:[%s0 + $0x368] sm:$0xff]
    %v131 = vld [vmem:[%s0 + $0x370] sm:$0xff]
    %v132 = vld [vmem:[%s0 + $0x378] sm:$0xff]
    %v133 = vld [vmem:[%s0 + $0x380] sm:$0xff]
    %v134 = vld [vmem:[%s0 + $0x388] sm:$0xff]
    %v135 = vld [vmem:[%s0 + $0x390] sm:$0xff]
    %v136 = vld [vmem:[%s0 + $0x398] sm:$0xff]
    %v137 = vld [vmem:[%s0 + $0x3a0] sm:$0xff]
    %v138 = vld [vmem:[%s0 + $0x3a8] sm:$0xff]
    %v139 = vld [vmem:[%s0 + $0x3b0] sm:$0xff]
    %v140 = vld [vmem:[%s0 + $0x3b8] sm:$0xff]
    %v141 = vld [vmem:[%s0 + $0x3c0] sm:$0xff]
    %v142 = vld [vmem:[%s0 + $0x3c8] sm:$0xff]
    %v143 = vld [vmem:[%s0 + $0x3d0] sm:$0xff]
    %v144 = vld [vmem:[%s0 + $0x3d8] sm:$0xff]
    %v145 = vld [vmem:[%s0 + $0x3e0] sm:$0xff]
    %v146 = vld [vmem:[%s0 + $0x3e8] sm:$0xff]
    %v147 = vld [vmem:[%s0 + $0x3f0] sm:$0xff]
    %v148 = vld [vmem:[%s0 + $0x3f8] sm:$0xff]
    %v149 = vld [vmem:[%s1] sm:$0xff]
    %v150 = vld [vmem:[%s1 + $0x8] sm:$0xff]
    %v151 = vld [vmem:[%s2] sm:$0x1]
    %v153 = vperm.slane %v151, 0
    %vm155 = vcmask 130048
    %v157 = vsel %vm155, %v21, 0
    %v160 = vsel %vm155, %v22, 0
    %v163 = vsel %vm155, %v23, 0
    %v166 = vsel %vm155, %v24, 0
    %v169 = vsel %vm155, %v25, 0
    %v172 = vsel %vm155, %v26, 0
    %v175 = vsel %vm155, %v27, 0
    %v178 = vsel %vm155, %v28, 0
    %v181 = vsel %vm155, %v29, 0
    %v184 = vsel %vm155, %v30, 0
    %v187 = vsel %vm155, %v31, 0
    %v190 = vsel %vm155, %v32, 0
    %v193 = vsel %vm155, %v33, 0
    %v196 = vsel %vm155, %v34, 0
    %v199 = vsel %vm155, %v35, 0
    %v202 = vsel %vm155, %v36, 0
    %v205 = vsel %vm155, %v37, 0
    %v208 = vsel %vm155, %v38, 0
    %v211 = vsel %vm155, %v39, 0
    %v214 = vsel %vm155, %v40, 0
    %v217 = vsel %vm155, %v41, 0
    %v220 = vsel %vm155, %v42, 0
    %v223 = vsel %vm155, %v43, 0
    %v226 = vsel %vm155, %v44, 0
    %v229 = vsel %vm155, %v45, 0
    %v232 = vsel %vm155, %v46, 0
    %v235 = vsel %vm155, %v47, 0
    %v238 = vsel %vm155, %v48, 0
    %v241 = vsel %vm155, %v49, 0
    %v244 = vsel %vm155, %v50, 0
    %v247 = vsel %vm155, %v51, 0
    %v250 = vsel %vm155, %v52, 0
    %v253 = vsel %vm155, %v53, 0
    %v256 = vsel %vm155, %v54, 0
    %v259 = vsel %vm155, %v55, 0
    %v262 = vsel %vm155, %v56, 0
    %v265 = vsel %vm155, %v57, 0
    %v268 = vsel %vm155, %v58, 0
    %v271 = vsel %vm155, %v59, 0
    %v274 = vsel %vm155, %v60, 0
    %v277 = vsel %vm155, %v61, 0
    %v280 = vsel %vm155, %v62, 0
    %v283 = vsel %vm155, %v63, 0
    %v286 = vsel %vm155, %v64, 0
    %v289 = vsel %vm155, %v65, 0
    %v292 = vsel %vm155, %v66, 0
    %v295 = vsel %vm155, %v67, 0
    %v298 = vsel %vm155, %v68, 0
    %v301 = vsel %vm155, %v69, 0
    %v304 = vsel %vm155, %v70, 0
    %v307 = vsel %vm155, %v71, 0
    %v310 = vsel %vm155, %v72, 0
    %v313 = vsel %vm155, %v73, 0
    %v316 = vsel %vm155, %v74, 0
    %v319 = vsel %vm155, %v75, 0
    %v322 = vsel %vm155, %v76, 0
    %v325 = vsel %vm155, %v77, 0
    %v328 = vsel %vm155, %v78, 0
    %v331 = vsel %vm155, %v79, 0
    %v334 = vsel %vm155, %v80, 0
    %v337 = vsel %vm155, %v81, 0
    %v340 = vsel %vm155, %v82, 0
    %v343 = vsel %vm155, %v83, 0
    %v346 = vsel %vm155, %v84, 0
    %v349 = vsel %vm155, %v85, 0
    %v352 = vsel %vm155, %v86, 0
    %v355 = vsel %vm155, %v87, 0
    %v358 = vsel %vm155, %v88, 0
    %v361 = vsel %vm155, %v89, 0
    %v364 = vsel %vm155, %v90, 0
    %v367 = vsel %vm155, %v91, 0
    %v370 = vsel %vm155, %v92, 0
    %v373 = vsel %vm155, %v93, 0
    %v376 = vsel %vm155, %v94, 0
    %v379 = vsel %vm155, %v95, 0
    %v382 = vsel %vm155, %v96, 0
    %v385 = vsel %vm155, %v97, 0
    %v388 = vsel %vm155, %v98, 0
    %v391 = vsel %vm155, %v99, 0
    %v394 = vsel %vm155, %v100, 0
    %v397 = vsel %vm155, %v101, 0
    %v400 = vsel %vm155, %v102, 0
    %v403 = vsel %vm155, %v103, 0
    %v406 = vsel %vm155, %v104, 0
    %v409 = vsel %vm155, %v105, 0
    %v412 = vsel %vm155, %v106, 0
    %v415 = vsel %vm155, %v107, 0
    %v418 = vsel %vm155, %v108, 0
    %v421 = vsel %vm155, %v109, 0
    %v424 = vsel %vm155, %v110, 0
    %v427 = vsel %vm155, %v111, 0
    %v430 = vsel %vm155, %v112, 0
    %v433 = vsel %vm155, %v113, 0
    %v436 = vsel %vm155, %v114, 0
    %v439 = vsel %vm155, %v115, 0
    %v442 = vsel %vm155, %v116, 0
    %v445 = vsel %vm155, %v117, 0
    %v448 = vsel %vm155, %v118, 0
    %v451 = vsel %vm155, %v119, 0
    %v454 = vsel %vm155, %v120, 0
    %v457 = vsel %vm155, %v121, 0
    %v460 = vsel %vm155, %v122, 0
    %v463 = vsel %vm155, %v123, 0
    %v466 = vsel %vm155, %v124, 0
    %v469 = vsel %vm155, %v125, 0
    %v472 = vsel %vm155, %v126, 0
    %v475 = vsel %vm155, %v127, 0
    %v478 = vsel %vm155, %v128, 0
    %v481 = vsel %vm155, %v129, 0
    %v484 = vsel %vm155, %v130, 0
    %v487 = vsel %vm155, %v131, 0
    %v490 = vsel %vm155, %v132, 0
    %v493 = vsel %vm155, %v133, 0
    %v496 = vsel %vm155, %v134, 0
    %v499 = vsel %vm155, %v135, 0
    %v502 = vsel %vm155, %v136, 0
    %v505 = vsel %vm155, %v137, 0
    %v508 = vsel %vm155, %v138, 0
    %v511 = vsel %vm155, %v139, 0
    %v514 = vsel %vm155, %v140, 0
    %v517 = vsel %vm155, %v141, 0
    %v520 = vsel %vm155, %v142, 0
    %v523 = vsel %vm155, %v143, 0
    %v526 = vsel %vm155, %v144, 0
    %v529 = vsel %vm155, %v145, 0
    %v532 = vsel %vm155, %v146, 0
    %v535 = vsel %vm155, %v147, 0
    %v538 = vsel %vm155, %v148, 0
    %540 = vmatpush.msra.mxu0 0.0
    %541 = vmatpush.msra.mxu0 0.0
    %542 = vmatpush.msra.mxu0 0.0
    %543 = vmatpush.msra.mxu0 0.0
    %544 = vmatpush.msra.mxu0 0.0
    %545 = vmatpush.msra.mxu0 0.0
    %546 = vmatpush.msra.mxu0 0.0
    %547 = vmatpush.msra.mxu0 0.0
    %548 = vmatpush.msra.mxu0 0.0
    %549 = vmatpush.msra.mxu0 0.0
    %550 = vmatpush.msra.mxu0 0.0
    %551 = vmatpush.msra.mxu0 0.0
    %552 = vmatpush.msra.mxu0 0.0
    %553 = vmatpush.msra.mxu0 0.0
    %554 = vmatpush.msra.mxu0 %v150
    %555 = vmatpush.msra.mxu0 %v149
    %556 = vmatmul.f32.gmra.mxu0 %v157
    %v557 = vpop.f32.mrf.mxu0
    %v558 = vadd.f32 %v153, %v557
    %559 = vmatmul.f32.gmra.mxu0 %v160
    %v560 = vpop.f32.mrf.mxu0
    %v561 = vadd.f32 %v153, %v560
    %562 = vmatmul.f32.gmra.mxu0 %v163
    %v563 = vpop.f32.mrf.mxu0
    %v564 = vadd.f32 %v153, %v563
    %565 = vmatmul.f32.gmra.mxu0 %v166
    %v566 = vpop.f32.mrf.mxu0
    %v567 = vadd.f32 %v153, %v566
    %568 = vmatmul.f32.gmra.mxu0 %v169
    %v569 = vpop.f32.mrf.mxu0
    %v570 = vadd.f32 %v153, %v569
    %571 = vmatmul.f32.gmra.mxu0 %v172
    %v572 = vpop.f32.mrf.mxu0
    %v573 = vadd.f32 %v153, %v572
    %574 = vmatmul.f32.gmra.mxu0 %v175
    %v575 = vpop.f32.mrf.mxu0
    %v576 = vadd.f32 %v153, %v575
    %577 = vmatmul.f32.gmra.mxu0 %v178
    %v578 = vpop.f32.mrf.mxu0
    %v579 = vadd.f32 %v153, %v578
    %580 = vmatmul.f32.gmra.mxu0 %v181
    %v581 = vpop.f32.mrf.mxu0
    %v582 = vadd.f32 %v153, %v581
    %583 = vmatmul.f32.gmra.mxu0 %v184
    %v584 = vpop.f32.mrf.mxu0
    %v585 = vadd.f32 %v153, %v584
    %586 = vmatmul.f32.gmra.mxu0 %v187
    %v587 = vpop.f32.mrf.mxu0
    %v588 = vadd.f32 %v153, %v587
    %589 = vmatmul.f32.gmra.mxu0 %v190
    %v590 = vpop.f32.mrf.mxu0
    %v591 = vadd.f32 %v153, %v590
    %592 = vmatmul.f32.gmra.mxu0 %v193
    %v593 = vpop.f32.mrf.mxu0
    %v594 = vadd.f32 %v153, %v593
    %595 = vmatmul.f32.gmra.mxu0 %v196
    %v596 = vpop.f32.mrf.mxu0
    %v597 = vadd.f32 %v153, %v596
    %598 = vmatmul.f32.gmra.mxu0 %v199
    %v599 = vpop.f32.mrf.mxu0
    %v600 = vadd.f32 %v153, %v599
    %601 = vmatmul.f32.gmra.mxu0 %v202
    %v602 = vpop.f32.mrf.mxu0
    %v603 = vadd.f32 %v153, %v602
    %604 = vmatmul.f32.gmra.mxu0 %v205
    %v605 = vpop.f32.mrf.mxu0
    %v606 = vadd.f32 %v153, %v605
    %607 = vmatmul.f32.gmra.mxu0 %v208
    %v608 = vpop.f32.mrf.mxu0
    %v609 = vadd.f32 %v153, %v608
    %610 = vmatmul.f32.gmra.mxu0 %v211
    %v611 = vpop.f32.mrf.mxu0
    %v612 = vadd.f32 %v153, %v611
    %613 = vmatmul.f32.gmra.mxu0 %v214
    %v614 = vpop.f32.mrf.mxu0
    %v615 = vadd.f32 %v153, %v614
    %616 = vmatmul.f32.gmra.mxu0 %v217
    %v617 = vpop.f32.mrf.mxu0
    %v618 = vadd.f32 %v153, %v617
    %619 = vmatmul.f32.gmra.mxu0 %v220
    %v620 = vpop.f32.mrf.mxu0
    %v621 = vadd.f32 %v153, %v620
    %622 = vmatmul.f32.gmra.mxu0 %v223
    %v623 = vpop.f32.mrf.mxu0
    %v624 = vadd.f32 %v153, %v623
    %625 = vmatmul.f32.gmra.mxu0 %v226
    %v626 = vpop.f32.mrf.mxu0
    %v627 = vadd.f32 %v153, %v626
    %628 = vmatmul.f32.gmra.mxu0 %v229
    %v629 = vpop.f32.mrf.mxu0
    %v630 = vadd.f32 %v153, %v629
    %631 = vmatmul.f32.gmra.mxu0 %v232
    %v632 = vpop.f32.mrf.mxu0
    %v633 = vadd.f32 %v153, %v632
    %634 = vmatmul.f32.gmra.mxu0 %v235
    %v635 = vpop.f32.mrf.mxu0
    %v636 = vadd.f32 %v153, %v635
    %637 = vmatmul.f32.gmra.mxu0 %v238
    %v638 = vpop.f32.mrf.mxu0
    %v639 = vadd.f32 %v153, %v638
    %640 = vmatmul.f32.gmra.mxu0 %v241
    %v641 = vpop.f32.mrf.mxu0
    %v642 = vadd.f32 %v153, %v641
    %643 = vmatmul.f32.gmra.mxu0 %v244
    %v644 = vpop.f32.mrf.mxu0
    %v645 = vadd.f32 %v153, %v644
    %646 = vmatmul.f32.gmra.mxu0 %v247
    %v647 = vpop.f32.mrf.mxu0
    %v648 = vadd.f32 %v153, %v647
    %649 = vmatmul.f32.gmra.mxu0 %v250
    %v650 = vpop.f32.mrf.mxu0
    %v651 = vadd.f32 %v153, %v650
    %652 = vmatmul.f32.gmra.mxu0 %v253
    %v653 = vpop.f32.mrf.mxu0
    %v654 = vadd.f32 %v153, %v653
    %655 = vmatmul.f32.gmra.mxu0 %v256
    %v656 = vpop.f32.mrf.mxu0
    %v657 = vadd.f32 %v153, %v656
    %658 = vmatmul.f32.gmra.mxu0 %v259
    %v659 = vpop.f32.mrf.mxu0
    %v660 = vadd.f32 %v153, %v659
    %661 = vmatmul.f32.gmra.mxu0 %v262
    %v662 = vpop.f32.mrf.mxu0
    %v663 = vadd.f32 %v153, %v662
    %664 = vmatmul.f32.gmra.mxu0 %v265
    %v665 = vpop.f32.mrf.mxu0
    %v666 = vadd.f32 %v153, %v665
    %667 = vmatmul.f32.gmra.mxu0 %v268
    %v668 = vpop.f32.mrf.mxu0
    %v669 = vadd.f32 %v153, %v668
    %670 = vmatmul.f32.gmra.mxu0 %v271
    %v671 = vpop.f32.mrf.mxu0
    %v672 = vadd.f32 %v153, %v671
    %673 = vmatmul.f32.gmra.mxu0 %v274
    %v674 = vpop.f32.mrf.mxu0
    %v675 = vadd.f32 %v153, %v674
    %676 = vmatmul.f32.gmra.mxu0 %v277
    %v677 = vpop.f32.mrf.mxu0
    %v678 = vadd.f32 %v153, %v677
    %679 = vmatmul.f32.gmra.mxu0 %v280
    %v680 = vpop.f32.mrf.mxu0
    %v681 = vadd.f32 %v153, %v680
    %682 = vmatmul.f32.gmra.mxu0 %v283
    %v683 = vpop.f32.mrf.mxu0
    %v684 = vadd.f32 %v153, %v683
    %685 = vmatmul.f32.gmra.mxu0 %v286
    %v686 = vpop.f32.mrf.mxu0
    %v687 = vadd.f32 %v153, %v686
    %688 = vmatmul.f32.gmra.mxu0 %v289
    %v689 = vpop.f32.mrf.mxu0
    %v690 = vadd.f32 %v153, %v689
    %691 = vmatmul.f32.gmra.mxu0 %v292
    %v692 = vpop.f32.mrf.mxu0
    %v693 = vadd.f32 %v153, %v692
    %694 = vmatmul.f32.gmra.mxu0 %v295
    %v695 = vpop.f32.mrf.mxu0
    %v696 = vadd.f32 %v153, %v695
    %697 = vmatmul.f32.gmra.mxu0 %v298
    %v698 = vpop.f32.mrf.mxu0
    %v699 = vadd.f32 %v153, %v698
    %700 = vmatmul.f32.gmra.mxu0 %v301
    %v701 = vpop.f32.mrf.mxu0
    %v702 = vadd.f32 %v153, %v701
    %703 = vmatmul.f32.gmra.mxu0 %v304
    %v704 = vpop.f32.mrf.mxu0
    %v705 = vadd.f32 %v153, %v704
    %706 = vmatmul.f32.gmra.mxu0 %v307
    %v707 = vpop.f32.mrf.mxu0
    %v708 = vadd.f32 %v153, %v707
    %709 = vmatmul.f32.gmra.mxu0 %v310
    %v710 = vpop.f32.mrf.mxu0
    %v711 = vadd.f32 %v153, %v710
    %712 = vmatmul.f32.gmra.mxu0 %v313
    %v713 = vpop.f32.mrf.mxu0
    %v714 = vadd.f32 %v153, %v713
    %715 = vmatmul.f32.gmra.mxu0 %v316
    %v716 = vpop.f32.mrf.mxu0
    %v717 = vadd.f32 %v153, %v716
    %718 = vmatmul.f32.gmra.mxu0 %v319
    %v719 = vpop.f32.mrf.mxu0
    %v720 = vadd.f32 %v153, %v719
    %721 = vmatmul.f32.gmra.mxu0 %v322
    %v722 = vpop.f32.mrf.mxu0
    %v723 = vadd.f32 %v153, %v722
    %724 = vmatmul.f32.gmra.mxu0 %v325
    %v725 = vpop.f32.mrf.mxu0
    %v726 = vadd.f32 %v153, %v725
    %727 = vmatmul.f32.gmra.mxu0 %v328
    %v728 = vpop.f32.mrf.mxu0
    %v729 = vadd.f32 %v153, %v728
    %730 = vmatmul.f32.gmra.mxu0 %v331
    %v731 = vpop.f32.mrf.mxu0
    %v732 = vadd.f32 %v153, %v731
    %733 = vmatmul.f32.gmra.mxu0 %v334
    %v734 = vpop.f32.mrf.mxu0
    %v735 = vadd.f32 %v153, %v734
    %736 = vmatmul.f32.gmra.mxu0 %v337
    %v737 = vpop.f32.mrf.mxu0
    %v738 = vadd.f32 %v153, %v737
    %739 = vmatmul.f32.gmra.mxu0 %v340
    %v740 = vpop.f32.mrf.mxu0
    %v741 = vadd.f32 %v153, %v740
    %742 = vmatmul.f32.gmra.mxu0 %v343
    %v743 = vpop.f32.mrf.mxu0
    %v744 = vadd.f32 %v153, %v743
    %745 = vmatmul.f32.gmra.mxu0 %v346
    %v746 = vpop.f32.mrf.mxu0
    %v747 = vadd.f32 %v153, %v746
    %748 = vmatmul.f32.gmra.mxu0 %v349
    %v749 = vpop.f32.mrf.mxu0
    %v750 = vadd.f32 %v153, %v749
    %751 = vmatmul.f32.gmra.mxu0 %v352
    %v752 = vpop.f32.mrf.mxu0
    %v753 = vadd.f32 %v153, %v752
    %754 = vmatmul.f32.gmra.mxu0 %v355
    %v755 = vpop.f32.mrf.mxu0
    %v756 = vadd.f32 %v153, %v755
    %757 = vmatmul.f32.gmra.mxu0 %v358
    %v758 = vpop.f32.mrf.mxu0
    %v759 = vadd.f32 %v153, %v758
    %760 = vmatmul.f32.gmra.mxu0 %v361
    %v761 = vpop.f32.mrf.mxu0
    %v762 = vadd.f32 %v153, %v761
    %763 = vmatmul.f32.gmra.mxu0 %v364
    %v764 = vpop.f32.mrf.mxu0
    %v765 = vadd.f32 %v153, %v764
    %766 = vmatmul.f32.gmra.mxu0 %v367
    %v767 = vpop.f32.mrf.mxu0
    %v768 = vadd.f32 %v153, %v767
    %769 = vmatmul.f32.gmra.mxu0 %v370
    %v770 = vpop.f32.mrf.mxu0
    %v771 = vadd.f32 %v153, %v770
    %772 = vmatmul.f32.gmra.mxu0 %v373
    %v773 = vpop.f32.mrf.mxu0
    %v774 = vadd.f32 %v153, %v773
    %775 = vmatmul.f32.gmra.mxu0 %v376
    %v776 = vpop.f32.mrf.mxu0
    %v777 = vadd.f32 %v153, %v776
    %778 = vmatmul.f32.gmra.mxu0 %v379
    %v779 = vpop.f32.mrf.mxu0
    %v780 = vadd.f32 %v153, %v779
    %781 = vmatmul.f32.gmra.mxu0 %v382
    %v782 = vpop.f32.mrf.mxu0
    %v783 = vadd.f32 %v153, %v782
    %784 = vmatmul.f32.gmra.mxu0 %v385
    %v785 = vpop.f32.mrf.mxu0
    %v786 = vadd.f32 %v153, %v785
    %787 = vmatmul.f32.gmra.mxu0 %v388
    %v788 = vpop.f32.mrf.mxu0
    %v789 = vadd.f32 %v153, %v788
    %790 = vmatmul.f32.gmra.mxu0 %v391
    %v791 = vpop.f32.mrf.mxu0
    %v792 = vadd.f32 %v153, %v791
    %793 = vmatmul.f32.gmra.mxu0 %v394
    %v794 = vpop.f32.mrf.mxu0
    %v795 = vadd.f32 %v153, %v794
    %796 = vmatmul.f32.gmra.mxu0 %v397
    %v797 = vpop.f32.mrf.mxu0
    %v798 = vadd.f32 %v153, %v797
    %799 = vmatmul.f32.gmra.mxu0 %v400
    %v800 = vpop.f32.mrf.mxu0
    %v801 = vadd.f32 %v153, %v800
    %802 = vmatmul.f32.gmra.mxu0 %v403
    %v803 = vpop.f32.mrf.mxu0
    %v804 = vadd.f32 %v153, %v803
    %805 = vmatmul.f32.gmra.mxu0 %v406
    %v806 = vpop.f32.mrf.mxu0
    %v807 = vadd.f32 %v153, %v806
    %808 = vmatmul.f32.gmra.mxu0 %v409
    %v809 = vpop.f32.mrf.mxu0
    %v810 = vadd.f32 %v153, %v809
    %811 = vmatmul.f32.gmra.mxu0 %v412
    %v812 = vpop.f32.mrf.mxu0
    %v813 = vadd.f32 %v153, %v812
    %814 = vmatmul.f32.gmra.mxu0 %v415
    %v815 = vpop.f32.mrf.mxu0
    %v816 = vadd.f32 %v153, %v815
    %817 = vmatmul.f32.gmra.mxu0 %v418
    %v818 = vpop.f32.mrf.mxu0
    %v819 = vadd.f32 %v153, %v818
    %820 = vmatmul.f32.gmra.mxu0 %v421
    %v821 = vpop.f32.mrf.mxu0
    %v822 = vadd.f32 %v153, %v821
    %823 = vmatmul.f32.gmra.mxu0 %v424
    %v824 = vpop.f32.mrf.mxu0
    %v825 = vadd.f32 %v153, %v824
    %826 = vmatmul.f32.gmra.mxu0 %v427
    %v827 = vpop.f32.mrf.mxu0
    %v828 = vadd.f32 %v153, %v827
    %829 = vmatmul.f32.gmra.mxu0 %v430
    %v830 = vpop.f32.mrf.mxu0
    %v831 = vadd.f32 %v153, %v830
    %832 = vmatmul.f32.gmra.mxu0 %v433
    %v833 = vpop.f32.mrf.mxu0
    %v834 = vadd.f32 %v153, %v833
    %835 = vmatmul.f32.gmra.mxu0 %v436
    %v836 = vpop.f32.mrf.mxu0
    %v837 = vadd.f32 %v153, %v836
    %838 = vmatmul.f32.gmra.mxu0 %v439
    %v839 = vpop.f32.mrf.mxu0
    %v840 = vadd.f32 %v153, %v839
    %841 = vmatmul.f32.gmra.mxu0 %v442
    %v842 = vpop.f32.mrf.mxu0
    %v843 = vadd.f32 %v153, %v842
    %844 = vmatmul.f32.gmra.mxu0 %v445
    %v845 = vpop.f32.mrf.mxu0
    %v846 = vadd.f32 %v153, %v845
    %847 = vmatmul.f32.gmra.mxu0 %v448
    %v848 = vpop.f32.mrf.mxu0
    %v849 = vadd.f32 %v153, %v848
    %850 = vmatmul.f32.gmra.mxu0 %v451
    %v851 = vpop.f32.mrf.mxu0
    %v852 = vadd.f32 %v153, %v851
    %853 = vmatmul.f32.gmra.mxu0 %v454
    %v854 = vpop.f32.mrf.mxu0
    %v855 = vadd.f32 %v153, %v854
    %856 = vmatmul.f32.gmra.mxu0 %v457
    %v857 = vpop.f32.mrf.mxu0
    %v858 = vadd.f32 %v153, %v857
    %859 = vmatmul.f32.gmra.mxu0 %v460
    %v860 = vpop.f32.mrf.mxu0
    %v861 = vadd.f32 %v153, %v860
    %862 = vmatmul.f32.gmra.mxu0 %v463
    %v863 = vpop.f32.mrf.mxu0
    %v864 = vadd.f32 %v153, %v863
    %865 = vmatmul.f32.gmra.mxu0 %v466
    %v866 = vpop.f32.mrf.mxu0
    %v867 = vadd.f32 %v153, %v866
    %868 = vmatmul.f32.gmra.mxu0 %v469
    %v869 = vpop.f32.mrf.mxu0
    %v870 = vadd.f32 %v153, %v869
    %871 = vmatmul.f32.gmra.mxu0 %v472
    %v872 = vpop.f32.mrf.mxu0
    %v873 = vadd.f32 %v153, %v872
    %874 = vmatmul.f32.gmra.mxu0 %v475
    %v875 = vpop.f32.mrf.mxu0
    %v876 = vadd.f32 %v153, %v875
    %877 = vmatmul.f32.gmra.mxu0 %v478
    %v878 = vpop.f32.mrf.mxu0
    %v879 = vadd.f32 %v153, %v878
    %880 = vmatmul.f32.gmra.mxu0 %v481
    %v881 = vpop.f32.mrf.mxu0
    %v882 = vadd.f32 %v153, %v881
    %883 = vmatmul.f32.gmra.mxu0 %v484
    %v884 = vpop.f32.mrf.mxu0
    %v885 = vadd.f32 %v153, %v884
    %886 = vmatmul.f32.gmra.mxu0 %v487
    %v887 = vpop.f32.mrf.mxu0
    %v888 = vadd.f32 %v153, %v887
    %889 = vmatmul.f32.gmra.mxu0 %v490
    %v890 = vpop.f32.mrf.mxu0
    %v891 = vadd.f32 %v153, %v890
    %892 = vmatmul.f32.gmra.mxu0 %v493
    %v893 = vpop.f32.mrf.mxu0
    %v894 = vadd.f32 %v153, %v893
    %895 = vmatmul.f32.gmra.mxu0 %v496
    %v896 = vpop.f32.mrf.mxu0
    %v897 = vadd.f32 %v153, %v896
    %898 = vmatmul.f32.gmra.mxu0 %v499
    %v899 = vpop.f32.mrf.mxu0
    %v900 = vadd.f32 %v153, %v899
    %901 = vmatmul.f32.gmra.mxu0 %v502
    %v902 = vpop.f32.mrf.mxu0
    %v903 = vadd.f32 %v153, %v902
    %904 = vmatmul.f32.gmra.mxu0 %v505
    %v905 = vpop.f32.mrf.mxu0
    %v906 = vadd.f32 %v153, %v905
    %907 = vmatmul.f32.gmra.mxu0 %v508
    %v908 = vpop.f32.mrf.mxu0
    %v909 = vadd.f32 %v153, %v908
    %910 = vmatmul.f32.gmra.mxu0 %v511
    %v911 = vpop.f32.mrf.mxu0
    %v912 = vadd.f32 %v153, %v911
    %913 = vmatmul.f32.gmra.mxu0 %v514
    %v914 = vpop.f32.mrf.mxu0
    %v915 = vadd.f32 %v153, %v914
    %916 = vmatmul.f32.gmra.mxu0 %v517
    %v917 = vpop.f32.mrf.mxu0
    %v918 = vadd.f32 %v153, %v917
    %919 = vmatmul.f32.gmra.mxu0 %v520
    %v920 = vpop.f32.mrf.mxu0
    %v921 = vadd.f32 %v153, %v920
    %922 = vmatmul.f32.gmra.mxu0 %v523
    %v923 = vpop.f32.mrf.mxu0
    %v924 = vadd.f32 %v153, %v923
    %925 = vmatmul.f32.gmra.mxu0 %v526
    %v926 = vpop.f32.mrf.mxu0
    %v927 = vadd.f32 %v153, %v926
    %928 = vmatmul.f32.gmra.mxu0 %v529
    %v929 = vpop.f32.mrf.mxu0
    %v930 = vadd.f32 %v153, %v929
    %931 = vmatmul.f32.gmra.mxu0 %v532
    %v932 = vpop.f32.mrf.mxu0
    %v933 = vadd.f32 %v153, %v932
    %934 = vmatmul.f32.gmra.mxu0 %v535
    %v935 = vpop.f32.mrf.mxu0
    %v936 = vadd.f32 %v153, %v935
    %937 = vmatmul.f32.gmra.mxu0 %v538
    %v938 = vpop.f32.mrf.mxu0
    %v939 = vadd.f32 %v153, %v938
    %940 = vdwg.mxu0
    %v941 = vmax.f32 %v558, 0.0
    %v942 = vmax.f32 %v561, 0.0
    %v943 = vmax.f32 %v564, 0.0
    %v944 = vmax.f32 %v567, 0.0
    %v945 = vmax.f32 %v570, 0.0
    %v946 = vmax.f32 %v573, 0.0
    %v947 = vmax.f32 %v576, 0.0
    %v948 = vmax.f32 %v579, 0.0
    %v949 = vmax.f32 %v582, 0.0
    %v950 = vmax.f32 %v585, 0.0
    %v951 = vmax.f32 %v588, 0.0
    %v952 = vmax.f32 %v591, 0.0
    %v953 = vmax.f32 %v594, 0.0
    %v954 = vmax.f32 %v597, 0.0
    %v955 = vmax.f32 %v600, 0.0
    %v956 = vmax.f32 %v603, 0.0
    %v957 = vmax.f32 %v606, 0.0
    %v958 = vmax.f32 %v609, 0.0
    %v959 = vmax.f32 %v612, 0.0
    %v960 = vmax.f32 %v615, 0.0
    %v961 = vmax.f32 %v618, 0.0
    %v962 = vmax.f32 %v621, 0.0
    %v963 = vmax.f32 %v624, 0.0
    %v964 = vmax.f32 %v627, 0.0
    %v965 = vmax.f32 %v630, 0.0
    %v966 = vmax.f32 %v633, 0.0
    %v967 = vmax.f32 %v636, 0.0
    %v968 = vmax.f32 %v639, 0.0
    %v969 = vmax.f32 %v642, 0.0
    %v970 = vmax.f32 %v645, 0.0
    %v971 = vmax.f32 %v648, 0.0
    %v972 = vmax.f32 %v651, 0.0
    %v973 = vmax.f32 %v654, 0.0
    %v974 = vmax.f32 %v657, 0.0
    %v975 = vmax.f32 %v660, 0.0
    %v976 = vmax.f32 %v663, 0.0
    %v977 = vmax.f32 %v666, 0.0
    %v978 = vmax.f32 %v669, 0.0
    %v979 = vmax.f32 %v672, 0.0
    %v980 = vmax.f32 %v675, 0.0
    %v981 = vmax.f32 %v678, 0.0
    %v982 = vmax.f32 %v681, 0.0
    %v983 = vmax.f32 %v684, 0.0
    %v984 = vmax.f32 %v687, 0.0
    %v985 = vmax.f32 %v690, 0.0
    %v986 = vmax.f32 %v693, 0.0
    %v987 = vmax.f32 %v696, 0.0
    %v988 = vmax.f32 %v699, 0.0
    %v989 = vmax.f32 %v702, 0.0
    %v990 = vmax.f32 %v705, 0.0
    %v991 = vmax.f32 %v708, 0.0
    %v992 = vmax.f32 %v711, 0.0
    %v993 = vmax.f32 %v714, 0.0
    %v994 = vmax.f32 %v717, 0.0
    %v995 = vmax.f32 %v720, 0.0
    %v996 = vmax.f32 %v723, 0.0
    %v997 = vmax.f32 %v726, 0.0
    %v998 = vmax.f32 %v729, 0.0
    %v999 = vmax.f32 %v732, 0.0
    %v1000 = vmax.f32 %v735, 0.0
    %v1001 = vmax.f32 %v738, 0.0
    %v1002 = vmax.f32 %v741, 0.0
    %v1003 = vmax.f32 %v744, 0.0
    %v1004 = vmax.f32 %v747, 0.0
    %v1005 = vmax.f32 %v750, 0.0
    %v1006 = vmax.f32 %v753, 0.0
    %v1007 = vmax.f32 %v756, 0.0
    %v1008 = vmax.f32 %v759, 0.0
    %v1009 = vmax.f32 %v762, 0.0
    %v1010 = vmax.f32 %v765, 0.0
    %v1011 = vmax.f32 %v768, 0.0
    %v1012 = vmax.f32 %v771, 0.0
    %v1013 = vmax.f32 %v774, 0.0
    %v1014 = vmax.f32 %v777, 0.0
    %v1015 = vmax.f32 %v780, 0.0
    %v1016 = vmax.f32 %v783, 0.0
    %v1017 = vmax.f32 %v786, 0.0
    %v1018 = vmax.f32 %v789, 0.0
    %v1019 = vmax.f32 %v792, 0.0
    %v1020 = vmax.f32 %v795, 0.0
    %v1021 = vmax.f32 %v798, 0.0
    %v1022 = vmax.f32 %v801, 0.0
    %v1023 = vmax.f32 %v804, 0.0
    %v1024 = vmax.f32 %v807, 0.0
    %v1025 = vmax.f32 %v810, 0.0
    %v1026 = vmax.f32 %v813, 0.0
    %v1027 = vmax.f32 %v816, 0.0
    %v1028 = vmax.f32 %v819, 0.0
    %v1029 = vmax.f32 %v822, 0.0
    %v1030 = vmax.f32 %v825, 0.0
    %v1031 = vmax.f32 %v828, 0.0
    %v1032 = vmax.f32 %v831, 0.0
    %v1033 = vmax.f32 %v834, 0.0
    %v1034 = vmax.f32 %v837, 0.0
    %v1035 = vmax.f32 %v840, 0.0
    %v1036 = vmax.f32 %v843, 0.0
    %v1037 = vmax.f32 %v846, 0.0
    %v1038 = vmax.f32 %v849, 0.0
    %v1039 = vmax.f32 %v852, 0.0
    %v1040 = vmax.f32 %v855, 0.0
    %v1041 = vmax.f32 %v858, 0.0
    %v1042 = vmax.f32 %v861, 0.0
    %v1043 = vmax.f32 %v864, 0.0
    %v1044 = vmax.f32 %v867, 0.0
    %v1045 = vmax.f32 %v870, 0.0
    %v1046 = vmax.f32 %v873, 0.0
    %v1047 = vmax.f32 %v876, 0.0
    %v1048 = vmax.f32 %v879, 0.0
    %v1049 = vmax.f32 %v882, 0.0
    %v1050 = vmax.f32 %v885, 0.0
    %v1051 = vmax.f32 %v888, 0.0
    %v1052 = vmax.f32 %v891, 0.0
    %v1053 = vmax.f32 %v894, 0.0
    %v1054 = vmax.f32 %v897, 0.0
    %v1055 = vmax.f32 %v900, 0.0
    %v1056 = vmax.f32 %v903, 0.0
    %v1057 = vmax.f32 %v906, 0.0
    %v1058 = vmax.f32 %v909, 0.0
    %v1059 = vmax.f32 %v912, 0.0
    %v1060 = vmax.f32 %v915, 0.0
    %v1061 = vmax.f32 %v918, 0.0
    %v1062 = vmax.f32 %v921, 0.0
    %v1063 = vmax.f32 %v924, 0.0
    %v1064 = vmax.f32 %v927, 0.0
    %v1065 = vmax.f32 %v930, 0.0
    %v1066 = vmax.f32 %v933, 0.0
    %v1067 = vmax.f32 %v936, 0.0
    %v1068 = vmax.f32 %v939, 0.0
    %v1069 = vrot.slane %v941, 7
    %v1070 = vrot.slane %v973, 7
    %v1071 = vrot.slane %v1005, 7
    %v1072 = vrot.slane %v1037, 7
    %v1073 = vrot.slane %v942, 7
    %v1074 = vrot.slane %v974, 7
    %v1075 = vrot.slane %v1006, 7
    %v1076 = vrot.slane %v1038, 7
    %v1077 = vrot.slane %v943, 7
    %v1078 = vrot.slane %v975, 7
    %v1079 = vrot.slane %v1007, 7
    %v1080 = vrot.slane %v1039, 7
    %v1081 = vrot.slane %v944, 7
    %v1082 = vrot.slane %v976, 7
    %v1083 = vrot.slane %v1008, 7
    %v1084 = vrot.slane %v1040, 7
    %v1085 = vrot.slane %v945, 7
    %v1086 = vrot.slane %v977, 7
    %v1087 = vrot.slane %v1009, 7
    %v1088 = vrot.slane %v1041, 7
    %v1089 = vrot.slane %v946, 7
    %v1090 = vrot.slane %v978, 7
    %v1091 = vrot.slane %v1010, 7
    %v1092 = vrot.slane %v1042, 7
    %v1093 = vrot.slane %v947, 7
    %v1094 = vrot.slane %v979, 7
    %v1095 = vrot.slane %v1011, 7
    %v1096 = vrot.slane %v1043, 7
    %v1097 = vrot.slane %v948, 7
    %v1098 = vrot.slane %v980, 7
    %v1099 = vrot.slane %v1012, 7
    %v1100 = vrot.slane %v1044, 7
    %v1101 = vrot.slane %v949, 7
    %v1102 = vrot.slane %v981, 7
    %v1103 = vrot.slane %v1013, 7
    %v1104 = vrot.slane %v1045, 7
    %v1105 = vrot.slane %v950, 7
    %v1106 = vrot.slane %v982, 7
    %v1107 = vrot.slane %v1014, 7
    %v1108 = vrot.slane %v1046, 7
    %v1109 = vrot.slane %v951, 7
    %v1110 = vrot.slane %v983, 7
    %v1111 = vrot.slane %v1015, 7
    %v1112 = vrot.slane %v1047, 7
    %v1113 = vrot.slane %v952, 7
    %v1114 = vrot.slane %v984, 7
    %v1115 = vrot.slane %v1016, 7
    %v1116 = vrot.slane %v1048, 7
    %v1117 = vrot.slane %v953, 7
    %v1118 = vrot.slane %v985, 7
    %v1119 = vrot.slane %v1017, 7
    %v1120 = vrot.slane %v1049, 7
    %v1121 = vrot.slane %v954, 7
    %v1122 = vrot.slane %v986, 7
    %v1123 = vrot.slane %v1018, 7
    %v1124 = vrot.slane %v1050, 7
    %v1125 = vrot.slane %v955, 7
    %v1126 = vrot.slane %v987, 7
    %v1127 = vrot.slane %v1019, 7
    %v1128 = vrot.slane %v1051, 7
    %v1129 = vrot.slane %v956, 7
    %v1130 = vrot.slane %v988, 7
    %v1131 = vrot.slane %v1020, 7
    %v1132 = vrot.slane %v1052, 7
    %v1133 = vrot.slane %v957, 7
    %v1134 = vrot.slane %v989, 7
    %v1135 = vrot.slane %v1021, 7
    %v1136 = vrot.slane %v1053, 7
    %v1137 = vrot.slane %v958, 7
    %v1138 = vrot.slane %v990, 7
    %v1139 = vrot.slane %v1022, 7
    %v1140 = vrot.slane %v1054, 7
    %v1141 = vrot.slane %v959, 7
    %v1142 = vrot.slane %v991, 7
    %v1143 = vrot.slane %v1023, 7
    %v1144 = vrot.slane %v1055, 7
    %v1145 = vrot.slane %v960, 7
    %v1146 = vrot.slane %v992, 7
    %v1147 = vrot.slane %v1024, 7
    %v1148 = vrot.slane %v1056, 7
    %v1149 = vrot.slane %v961, 7
    %v1150 = vrot.slane %v993, 7
    %v1151 = vrot.slane %v1025, 7
    %v1152 = vrot.slane %v1057, 7
    %v1153 = vrot.slane %v962, 7
    %v1154 = vrot.slane %v994, 7
    %v1155 = vrot.slane %v1026, 7
    %v1156 = vrot.slane %v1058, 7
    %v1157 = vrot.slane %v963, 7
    %v1158 = vrot.slane %v995, 7
    %v1159 = vrot.slane %v1027, 7
    %v1160 = vrot.slane %v1059, 7
    %v1161 = vrot.slane %v964, 7
    %v1162 = vrot.slane %v996, 7
    %v1163 = vrot.slane %v1028, 7
    %v1164 = vrot.slane %v1060, 7
    %v1165 = vrot.slane %v965, 7
    %v1166 = vrot.slane %v997, 7
    %v1167 = vrot.slane %v1029, 7
    %v1168 = vrot.slane %v1061, 7
    %v1169 = vrot.slane %v966, 7
    %v1170 = vrot.slane %v998, 7
    %v1171 = vrot.slane %v1030, 7
    %v1172 = vrot.slane %v1062, 7
    %v1173 = vrot.slane %v967, 7
    %v1174 = vrot.slane %v999, 7
    %v1175 = vrot.slane %v1031, 7
    %v1176 = vrot.slane %v1063, 7
    %v1177 = vrot.slane %v968, 7
    %v1178 = vrot.slane %v1000, 7
    %v1179 = vrot.slane %v1032, 7
    %v1180 = vrot.slane %v1064, 7
    %v1181 = vrot.slane %v969, 7
    %v1182 = vrot.slane %v1001, 7
    %v1183 = vrot.slane %v1033, 7
    %v1184 = vrot.slane %v1065, 7
    %v1185 = vrot.slane %v970, 7
    %v1186 = vrot.slane %v1002, 7
    %v1187 = vrot.slane %v1034, 7
    %v1188 = vrot.slane %v1066, 7
    %v1189 = vrot.slane %v971, 7
    %v1190 = vrot.slane %v1003, 7
    %v1191 = vrot.slane %v1035, 7
    %v1192 = vrot.slane %v1067, 7
    %v1193 = vrot.slane %v972, 7
    %v1194 = vrot.slane %v1004, 7
    %v1195 = vrot.slane %v1036, 7
    %v1196 = vrot.slane %v1068, 7
    %v1197 = vlaneseq
    %v1198 = vshrl.u32 %v1197, 7
    %vm1199 = vcmp.lt.s32.totalorder %v1198, 1
    %v1200 = vsel %vm1199, %v1189, %v1193
    %v1201 = vsel %vm1199, %v1190, %v1194
    %v1202 = vsel %vm1199, %v1191, %v1195
    %v1203 = vsel %vm1199, %v1192, %v1196
    %v1204 = vsel %vm1199, %v1185, %v1189
    %v1205 = vsel %vm1199, %v1186, %v1190
    %v1206 = vsel %vm1199, %v1187, %v1191
    %v1207 = vsel %vm1199, %v1188, %v1192
    %v1208 = vsel %vm1199, %v1181, %v1185
    %v1209 = vsel %vm1199, %v1182, %v1186
    %v1210 = vsel %vm1199, %v1183, %v1187
    %v1211 = vsel %vm1199, %v1184, %v1188
    %v1212 = vsel %vm1199, %v1177, %v1181
    %v1213 = vsel %vm1199, %v1178, %v1182
    %v1214 = vsel %vm1199, %v1179, %v1183
    %v1215 = vsel %vm1199, %v1180, %v1184
    %v1216 = vsel %vm1199, %v1173, %v1177
    %v1217 = vsel %vm1199, %v1174, %v1178
    %v1218 = vsel %vm1199, %v1175, %v1179
    %v1219 = vsel %vm1199, %v1176, %v1180
    %v1220 = vsel %vm1199, %v1169, %v1173
    %v1221 = vsel %vm1199, %v1170, %v1174
    %v1222 = vsel %vm1199, %v1171, %v1175
    %v1223 = vsel %vm1199, %v1172, %v1176
    %v1224 = vsel %vm1199, %v1165, %v1169
    %v1225 = vsel %vm1199, %v1166, %v1170
    %v1226 = vsel %vm1199, %v1167, %v1171
    %v1227 = vsel %vm1199, %v1168, %v1172
    %v1228 = vsel %vm1199, %v1161, %v1165
    %v1229 = vsel %vm1199, %v1162, %v1166
    %v1230 = vsel %vm1199, %v1163, %v1167
    %v1231 = vsel %vm1199, %v1164, %v1168
    %v1232 = vsel %vm1199, %v1157, %v1161
    %v1233 = vsel %vm1199, %v1158, %v1162
    %v1234 = vsel %vm1199, %v1159, %v1163
    %v1235 = vsel %vm1199, %v1160, %v1164
    %v1236 = vsel %vm1199, %v1153, %v1157
    %v1237 = vsel %vm1199, %v1154, %v1158
    %v1238 = vsel %vm1199, %v1155, %v1159
    %v1239 = vsel %vm1199, %v1156, %v1160
    %v1240 = vsel %vm1199, %v1149, %v1153
    %v1241 = vsel %vm1199, %v1150, %v1154
    %v1242 = vsel %vm1199, %v1151, %v1155
    %v1243 = vsel %vm1199, %v1152, %v1156
    %v1244 = vsel %vm1199, %v1145, %v1149
    %v1245 = vsel %vm1199, %v1146, %v1150
    %v1246 = vsel %vm1199, %v1147, %v1151
    %v1247 = vsel %vm1199, %v1148, %v1152
    %v1248 = vsel %vm1199, %v1141, %v1145
    %v1249 = vsel %vm1199, %v1142, %v1146
    %v1250 = vsel %vm1199, %v1143, %v1147
    %v1251 = vsel %vm1199, %v1144, %v1148
    %v1252 = vsel %vm1199, %v1137, %v1141
    %v1253 = vsel %vm1199, %v1138, %v1142
    %v1254 = vsel %vm1199, %v1139, %v1143
    %v1255 = vsel %vm1199, %v1140, %v1144
    %v1256 = vsel %vm1199, %v1133, %v1137
    %v1257 = vsel %vm1199, %v1134, %v1138
    %v1258 = vsel %vm1199, %v1135, %v1139
    %v1259 = vsel %vm1199, %v1136, %v1140
    %v1260 = vsel %vm1199, %v1129, %v1133
    %v1261 = vsel %vm1199, %v1130, %v1134
    %v1262 = vsel %vm1199, %v1131, %v1135
    %v1263 = vsel %vm1199, %v1132, %v1136
    %v1264 = vsel %vm1199, %v1125, %v1129
    %v1265 = vsel %vm1199, %v1126, %v1130
    %v1266 = vsel %vm1199, %v1127, %v1131
    %v1267 = vsel %vm1199, %v1128, %v1132
    %v1268 = vsel %vm1199, %v1121, %v1125
    %v1269 = vsel %vm1199, %v1122, %v1126
    %v1270 = vsel %vm1199, %v1123, %v1127
    %v1271 = vsel %vm1199, %v1124, %v1128
    %v1272 = vsel %vm1199, %v1117, %v1121
    %v1273 = vsel %vm1199, %v1118, %v1122
    %v1274 = vsel %vm1199, %v1119, %v1123
    %v1275 = vsel %vm1199, %v1120, %v1124
    %v1276 = vsel %vm1199, %v1113, %v1117
    %v1277 = vsel %vm1199, %v1114, %v1118
    %v1278 = vsel %vm1199, %v1115, %v1119
    %v1279 = vsel %vm1199, %v1116, %v1120
    %v1280 = vsel %vm1199, %v1109, %v1113
    %v1281 = vsel %vm1199, %v1110, %v1114
    %v1282 = vsel %vm1199, %v1111, %v1115
    %v1283 = vsel %vm1199, %v1112, %v1116
    %v1284 = vsel %vm1199, %v1105, %v1109
    %v1285 = vsel %vm1199, %v1106, %v1110
    %v1286 = vsel %vm1199, %v1107, %v1111
    %v1287 = vsel %vm1199, %v1108, %v1112
    %v1288 = vsel %vm1199, %v1101, %v1105
    %v1289 = vsel %vm1199, %v1102, %v1106
    %v1290 = vsel %vm1199, %v1103, %v1107
    %v1291 = vsel %vm1199, %v1104, %v1108
    %v1292 = vsel %vm1199, %v1097, %v1101
    %v1293 = vsel %vm1199, %v1098, %v1102
    %v1294 = vsel %vm1199, %v1099, %v1103
    %v1295 = vsel %vm1199, %v1100, %v1104
    %v1296 = vsel %vm1199, %v1093, %v1097
    %v1297 = vsel %vm1199, %v1094, %v1098
    %v1298 = vsel %vm1199, %v1095, %v1099
    %v1299 = vsel %vm1199, %v1096, %v1100
    %v1300 = vsel %vm1199, %v1089, %v1093
    %v1301 = vsel %vm1199, %v1090, %v1094
    %v1302 = vsel %vm1199, %v1091, %v1095
    %v1303 = vsel %vm1199, %v1092, %v1096
    %v1304 = vsel %vm1199, %v1085, %v1089
    %v1305 = vsel %vm1199, %v1086, %v1090
    %v1306 = vsel %vm1199, %v1087, %v1091
    %v1307 = vsel %vm1199, %v1088, %v1092
    %v1308 = vsel %vm1199, %v1081, %v1085
    %v1309 = vsel %vm1199, %v1082, %v1086
    %v1310 = vsel %vm1199, %v1083, %v1087
    %v1311 = vsel %vm1199, %v1084, %v1088
    %v1312 = vsel %vm1199, %v1077, %v1081
    %v1313 = vsel %vm1199, %v1078, %v1082
    %v1314 = vsel %vm1199, %v1079, %v1083
    %v1315 = vsel %vm1199, %v1080, %v1084
    %v1316 = vsel %vm1199, %v1073, %v1077
    %v1317 = vsel %vm1199, %v1074, %v1078
    %v1318 = vsel %vm1199, %v1075, %v1079
    %v1319 = vsel %vm1199, %v1076, %v1080
    %v1320 = vsel %vm1199, %v1069, %v1073
    %v1321 = vsel %vm1199, %v1070, %v1074
    %v1322 = vsel %vm1199, %v1071, %v1075
    %v1323 = vsel %vm1199, %v1072, %v1076
    %v1324 = vsel %vm1199, %v1193, %v1069
    %v1325 = vsel %vm1199, %v1194, %v1070
    %v1326 = vsel %vm1199, %v1195, %v1071
    %v1327 = vsel %vm1199, %v1196, %v1072
    %v1328 = vrot.slane %v941, 1
    %v1329 = vrot.slane %v973, 1
    %v1330 = vrot.slane %v1005, 1
    %v1331 = vrot.slane %v1037, 1
    %v1332 = vrot.slane %v942, 1
    %v1333 = vrot.slane %v974, 1
    %v1334 = vrot.slane %v1006, 1
    %v1335 = vrot.slane %v1038, 1
    %v1336 = vrot.slane %v943, 1
    %v1337 = vrot.slane %v975, 1
    %v1338 = vrot.slane %v1007, 1
    %v1339 = vrot.slane %v1039, 1
    %v1340 = vrot.slane %v944, 1
    %v1341 = vrot.slane %v976, 1
    %v1342 = vrot.slane %v1008, 1
    %v1343 = vrot.slane %v1040, 1
    %v1344 = vrot.slane %v945, 1
    %v1345 = vrot.slane %v977, 1
    %v1346 = vrot.slane %v1009, 1
    %v1347 = vrot.slane %v1041, 1
    %v1348 = vrot.slane %v946, 1
    %v1349 = vrot.slane %v978, 1
    %v1350 = vrot.slane %v1010, 1
    %v1351 = vrot.slane %v1042, 1
    %v1352 = vrot.slane %v947, 1
    %v1353 = vrot.slane %v979, 1
    %v1354 = vrot.slane %v1011, 1
    %v1355 = vrot.slane %v1043, 1
    %v1356 = vrot.slane %v948, 1
    %v1357 = vrot.slane %v980, 1
    %v1358 = vrot.slane %v1012, 1
    %v1359 = vrot.slane %v1044, 1
    %v1360 = vrot.slane %v949, 1
    %v1361 = vrot.slane %v981, 1
    %v1362 = vrot.slane %v1013, 1
    %v1363 = vrot.slane %v1045, 1
    %v1364 = vrot.slane %v950, 1
    %v1365 = vrot.slane %v982, 1
    %v1366 = vrot.slane %v1014, 1
    %v1367 = vrot.slane %v1046, 1
    %v1368 = vrot.slane %v951, 1
    %v1369 = vrot.slane %v983, 1
    %v1370 = vrot.slane %v1015, 1
    %v1371 = vrot.slane %v1047, 1
    %v1372 = vrot.slane %v952, 1
    %v1373 = vrot.slane %v984, 1
    %v1374 = vrot.slane %v1016, 1
    %v1375 = vrot.slane %v1048, 1
    %v1376 = vrot.slane %v953, 1
    %v1377 = vrot.slane %v985, 1
    %v1378 = vrot.slane %v1017, 1
    %v1379 = vrot.slane %v1049, 1
    %v1380 = vrot.slane %v954, 1
    %v1381 = vrot.slane %v986, 1
    %v1382 = vrot.slane %v1018, 1
    %v1383 = vrot.slane %v1050, 1
    %v1384 = vrot.slane %v955, 1
    %v1385 = vrot.slane %v987, 1
    %v1386 = vrot.slane %v1019, 1
    %v1387 = vrot.slane %v1051, 1
    %v1388 = vrot.slane %v956, 1
    %v1389 = vrot.slane %v988, 1
    %v1390 = vrot.slane %v1020, 1
    %v1391 = vrot.slane %v1052, 1
    %v1392 = vrot.slane %v957, 1
    %v1393 = vrot.slane %v989, 1
    %v1394 = vrot.slane %v1021, 1
    %v1395 = vrot.slane %v1053, 1
    %v1396 = vrot.slane %v958, 1
    %v1397 = vrot.slane %v990, 1
    %v1398 = vrot.slane %v1022, 1
    %v1399 = vrot.slane %v1054, 1
    %v1400 = vrot.slane %v959, 1
    %v1401 = vrot.slane %v991, 1
    %v1402 = vrot.slane %v1023, 1
    %v1403 = vrot.slane %v1055, 1
    %v1404 = vrot.slane %v960, 1
    %v1405 = vrot.slane %v992, 1
    %v1406 = vrot.slane %v1024, 1
    %v1407 = vrot.slane %v1056, 1
    %v1408 = vrot.slane %v961, 1
    %v1409 = vrot.slane %v993, 1
    %v1410 = vrot.slane %v1025, 1
    %v1411 = vrot.slane %v1057, 1
    %v1412 = vrot.slane %v962, 1
    %v1413 = vrot.slane %v994, 1
    %v1414 = vrot.slane %v1026, 1
    %v1415 = vrot.slane %v1058, 1
    %v1416 = vrot.slane %v963, 1
    %v1417 = vrot.slane %v995, 1
    %v1418 = vrot.slane %v1027, 1
    %v1419 = vrot.slane %v1059, 1
    %v1420 = vrot.slane %v964, 1
    %v1421 = vrot.slane %v996, 1
    %v1422 = vrot.slane %v1028, 1
    %v1423 = vrot.slane %v1060, 1
    %v1424 = vrot.slane %v965, 1
    %v1425 = vrot.slane %v997, 1
    %v1426 = vrot.slane %v1029, 1
    %v1427 = vrot.slane %v1061, 1
    %v1428 = vrot.slane %v966, 1
    %v1429 = vrot.slane %v998, 1
    %v1430 = vrot.slane %v1030, 1
    %v1431 = vrot.slane %v1062, 1
    %v1432 = vrot.slane %v967, 1
    %v1433 = vrot.slane %v999, 1
    %v1434 = vrot.slane %v1031, 1
    %v1435 = vrot.slane %v1063, 1
    %v1436 = vrot.slane %v968, 1
    %v1437 = vrot.slane %v1000, 1
    %v1438 = vrot.slane %v1032, 1
    %v1439 = vrot.slane %v1064, 1
    %v1440 = vrot.slane %v969, 1
    %v1441 = vrot.slane %v1001, 1
    %v1442 = vrot.slane %v1033, 1
    %v1443 = vrot.slane %v1065, 1
    %v1444 = vrot.slane %v970, 1
    %v1445 = vrot.slane %v1002, 1
    %v1446 = vrot.slane %v1034, 1
    %v1447 = vrot.slane %v1066, 1
    %v1448 = vrot.slane %v971, 1
    %v1449 = vrot.slane %v1003, 1
    %v1450 = vrot.slane %v1035, 1
    %v1451 = vrot.slane %v1067, 1
    %v1452 = vrot.slane %v972, 1
    %v1453 = vrot.slane %v1004, 1
    %v1454 = vrot.slane %v1036, 1
    %v1455 = vrot.slane %v1068, 1
    %vm1456 = vcmp.lt.s32.totalorder %v1198, 7
    %v1457 = vsel %vm1456, %v1448, %v1452
    %v1458 = vsel %vm1456, %v1449, %v1453
    %v1459 = vsel %vm1456, %v1450, %v1454
    %v1460 = vsel %vm1456, %v1451, %v1455
    %v1461 = vsel %vm1456, %v1444, %v1448
    %v1462 = vsel %vm1456, %v1445, %v1449
    %v1463 = vsel %vm1456, %v1446, %v1450
    %v1464 = vsel %vm1456, %v1447, %v1451
    %v1465 = vsel %vm1456, %v1440, %v1444
    %v1466 = vsel %vm1456, %v1441, %v1445
    %v1467 = vsel %vm1456, %v1442, %v1446
    %v1468 = vsel %vm1456, %v1443, %v1447
    %v1469 = vsel %vm1456, %v1436, %v1440
    %v1470 = vsel %vm1456, %v1437, %v1441
    %v1471 = vsel %vm1456, %v1438, %v1442
    %v1472 = vsel %vm1456, %v1439, %v1443
    %v1473 = vsel %vm1456, %v1432, %v1436
    %v1474 = vsel %vm1456, %v1433, %v1437
    %v1475 = vsel %vm1456, %v1434, %v1438
    %v1476 = vsel %vm1456, %v1435, %v1439
    %v1477 = vsel %vm1456, %v1428, %v1432
    %v1478 = vsel %vm1456, %v1429, %v1433
    %v1479 = vsel %vm1456, %v1430, %v1434
    %v1480 = vsel %vm1456, %v1431, %v1435
    %v1481 = vsel %vm1456, %v1424, %v1428
    %v1482 = vsel %vm1456, %v1425, %v1429
    %v1483 = vsel %vm1456, %v1426, %v1430
    %v1484 = vsel %vm1456, %v1427, %v1431
    %v1485 = vsel %vm1456, %v1420, %v1424
    %v1486 = vsel %vm1456, %v1421, %v1425
    %v1487 = vsel %vm1456, %v1422, %v1426
    %v1488 = vsel %vm1456, %v1423, %v1427
    %v1489 = vsel %vm1456, %v1416, %v1420
    %v1490 = vsel %vm1456, %v1417, %v1421
    %v1491 = vsel %vm1456, %v1418, %v1422
    %v1492 = vsel %vm1456, %v1419, %v1423
    %v1493 = vsel %vm1456, %v1412, %v1416
    %v1494 = vsel %vm1456, %v1413, %v1417
    %v1495 = vsel %vm1456, %v1414, %v1418
    %v1496 = vsel %vm1456, %v1415, %v1419
    %v1497 = vsel %vm1456, %v1408, %v1412
    %v1498 = vsel %vm1456, %v1409, %v1413
    %v1499 = vsel %vm1456, %v1410, %v1414
    %v1500 = vsel %vm1456, %v1411, %v1415
    %v1501 = vsel %vm1456, %v1404, %v1408
    %v1502 = vsel %vm1456, %v1405, %v1409
    %v1503 = vsel %vm1456, %v1406, %v1410
    %v1504 = vsel %vm1456, %v1407, %v1411
    %v1505 = vsel %vm1456, %v1400, %v1404
    %v1506 = vsel %vm1456, %v1401, %v1405
    %v1507 = vsel %vm1456, %v1402, %v1406
    %v1508 = vsel %vm1456, %v1403, %v1407
    %v1509 = vsel %vm1456, %v1396, %v1400
    %v1510 = vsel %vm1456, %v1397, %v1401
    %v1511 = vsel %vm1456, %v1398, %v1402
    %v1512 = vsel %vm1456, %v1399, %v1403
    %v1513 = vsel %vm1456, %v1392, %v1396
    %v1514 = vsel %vm1456, %v1393, %v1397
    %v1515 = vsel %vm1456, %v1394, %v1398
    %v1516 = vsel %vm1456, %v1395, %v1399
    %v1517 = vsel %vm1456, %v1388, %v1392
    %v1518 = vsel %vm1456, %v1389, %v1393
    %v1519 = vsel %vm1456, %v1390, %v1394
    %v1520 = vsel %vm1456, %v1391, %v1395
    %v1521 = vsel %vm1456, %v1384, %v1388
    %v1522 = vsel %vm1456, %v1385, %v1389
    %v1523 = vsel %vm1456, %v1386, %v1390
    %v1524 = vsel %vm1456, %v1387, %v1391
    %v1525 = vsel %vm1456, %v1380, %v1384
    %v1526 = vsel %vm1456, %v1381, %v1385
    %v1527 = vsel %vm1456, %v1382, %v1386
    %v1528 = vsel %vm1456, %v1383, %v1387
    %v1529 = vsel %vm1456, %v1376, %v1380
    %v1530 = vsel %vm1456, %v1377, %v1381
    %v1531 = vsel %vm1456, %v1378, %v1382
    %v1532 = vsel %vm1456, %v1379, %v1383
    %v1533 = vsel %vm1456, %v1372, %v1376
    %v1534 = vsel %vm1456, %v1373, %v1377
    %v1535 = vsel %vm1456, %v1374, %v1378
    %v1536 = vsel %vm1456, %v1375, %v1379
    %v1537 = vsel %vm1456, %v1368, %v1372
    %v1538 = vsel %vm1456, %v1369, %v1373
    %v1539 = vsel %vm1456, %v1370, %v1374
    %v1540 = vsel %vm1456, %v1371, %v1375
    %v1541 = vsel %vm1456, %v1364, %v1368
    %v1542 = vsel %vm1456, %v1365, %v1369
    %v1543 = vsel %vm1456, %v1366, %v1370
    %v1544 = vsel %vm1456, %v1367, %v1371
    %v1545 = vsel %vm1456, %v1360, %v1364
    %v1546 = vsel %vm1456, %v1361, %v1365
    %v1547 = vsel %vm1456, %v1362, %v1366
    %v1548 = vsel %vm1456, %v1363, %v1367
    %v1549 = vsel %vm1456, %v1356, %v1360
    %v1550 = vsel %vm1456, %v1357, %v1361
    %v1551 = vsel %vm1456, %v1358, %v1362
    %v1552 = vsel %vm1456, %v1359, %v1363
    %v1553 = vsel %vm1456, %v1352, %v1356
    %v1554 = vsel %vm1456, %v1353, %v1357
    %v1555 = vsel %vm1456, %v1354, %v1358
    %v1556 = vsel %vm1456, %v1355, %v1359
    %v1557 = vsel %vm1456, %v1348, %v1352
    %v1558 = vsel %vm1456, %v1349, %v1353
    %v1559 = vsel %vm1456, %v1350, %v1354
    %v1560 = vsel %vm1456, %v1351, %v1355
    %v1561 = vsel %vm1456, %v1344, %v1348
    %v1562 = vsel %vm1456, %v1345, %v1349
    %v1563 = vsel %vm1456, %v1346, %v1350
    %v1564 = vsel %vm1456, %v1347, %v1351
    %v1565 = vsel %vm1456, %v1340, %v1344
    %v1566 = vsel %vm1456, %v1341, %v1345
    %v1567 = vsel %vm1456, %v1342, %v1346
    %v1568 = vsel %vm1456, %v1343, %v1347
    %v1569 = vsel %vm1456, %v1336, %v1340
    %v1570 = vsel %vm1456, %v1337, %v1341
    %v1571 = vsel %vm1456, %v1338, %v1342
    %v1572 = vsel %vm1456, %v1339, %v1343
    %v1573 = vsel %vm1456, %v1332, %v1336
    %v1574 = vsel %vm1456, %v1333, %v1337
    %v1575 = vsel %vm1456, %v1334, %v1338
    %v1576 = vsel %vm1456, %v1335, %v1339
    %v1577 = vsel %vm1456, %v1328, %v1332
    %v1578 = vsel %vm1456, %v1329, %v1333
    %v1579 = vsel %vm1456, %v1330, %v1334
    %v1580 = vsel %vm1456, %v1331, %v1335
    %v1581 = vsel %vm1456, %v1452, %v1328
    %v1582 = vsel %vm1456, %v1453, %v1329
    %v1583 = vsel %vm1456, %v1454, %v1330
    %v1584 = vsel %vm1456, %v1455, %v1331
    %v1585 = vadd.f32 %v1324, %v1577
    %v1586 = vadd.f32 %v1320, %v1573
    %v1587 = vadd.f32 %v1316, %v1569
    %v1588 = vadd.f32 %v1312, %v1565
    %v1589 = vadd.f32 %v1308, %v1561
    %v1590 = vadd.f32 %v1304, %v1557
    %v1591 = vadd.f32 %v1300, %v1553
    %v1592 = vadd.f32 %v1296, %v1549
    %v1593 = vadd.f32 %v1292, %v1545
    %v1594 = vadd.f32 %v1288, %v1541
    %v1595 = vadd.f32 %v1284, %v1537
    %v1596 = vadd.f32 %v1280, %v1533
    %v1597 = vadd.f32 %v1276, %v1529
    %v1598 = vadd.f32 %v1272, %v1525
    %v1599 = vadd.f32 %v1268, %v1521
    %v1600 = vadd.f32 %v1264, %v1517
    %v1601 = vadd.f32 %v1260, %v1513
    %v1602 = vadd.f32 %v1256, %v1509
    %v1603 = vadd.f32 %v1252, %v1505
    %v1604 = vadd.f32 %v1248, %v1501
    %v1605 = vadd.f32 %v1244, %v1497
    %v1606 = vadd.f32 %v1240, %v1493
    %v1607 = vadd.f32 %v1236, %v1489
    %v1608 = vadd.f32 %v1232, %v1485
    %v1609 = vadd.f32 %v1228, %v1481
    %v1610 = vadd.f32 %v1224, %v1477
    %v1611 = vadd.f32 %v1220, %v1473
    %v1612 = vadd.f32 %v1216, %v1469
    %v1613 = vadd.f32 %v1212, %v1465
    %v1614 = vadd.f32 %v1208, %v1461
    %v1615 = vadd.f32 %v1204, %v1457
    %v1616 = vadd.f32 %v1200, %v1581
    %v1617 = vadd.f32 %v1325, %v1578
    %v1618 = vadd.f32 %v1321, %v1574
    %v1619 = vadd.f32 %v1317, %v1570
    %v1620 = vadd.f32 %v1313, %v1566
    %v1621 = vadd.f32 %v1309, %v1562
    %v1622 = vadd.f32 %v1305, %v1558
    %v1623 = vadd.f32 %v1301, %v1554
    %v1624 = vadd.f32 %v1297, %v1550
    %v1625 = vadd.f32 %v1293, %v1546
    %v1626 = vadd.f32 %v1289, %v1542
    %v1627 = vadd.f32 %v1285, %v1538
    %v1628 = vadd.f32 %v1281, %v1534
    %v1629 = vadd.f32 %v1277, %v1530
    %v1630 = vadd.f32 %v1273, %v1526
    %v1631 = vadd.f32 %v1269, %v1522
    %v1632 = vadd.f32 %v1265, %v1518
    %v1633 = vadd.f32 %v1261, %v1514
    %v1634 = vadd.f32 %v1257, %v1510
    %v1635 = vadd.f32 %v1253, %v1506
    %v1636 = vadd.f32 %v1249, %v1502
    %v1637 = vadd.f32 %v1245, %v1498
    %v1638 = vadd.f32 %v1241, %v1494
    %v1639 = vadd.f32 %v1237, %v1490
    %v1640 = vadd.f32 %v1233, %v1486
    %v1641 = vadd.f32 %v1229, %v1482
    %v1642 = vadd.f32 %v1225, %v1478
    %v1643 = vadd.f32 %v1221, %v1474
    %v1644 = vadd.f32 %v1217, %v1470
    %v1645 = vadd.f32 %v1213, %v1466
    %v1646 = vadd.f32 %v1209, %v1462
    %v1647 = vadd.f32 %v1205, %v1458
    %v1648 = vadd.f32 %v1201, %v1582
    %v1649 = vadd.f32 %v1326, %v1579
    %v1650 = vadd.f32 %v1322, %v1575
    %v1651 = vadd.f32 %v1318, %v1571
    %v1652 = vadd.f32 %v1314, %v1567
    %v1653 = vadd.f32 %v1310, %v1563
    %v1654 = vadd.f32 %v1306, %v1559
    %v1655 = vadd.f32 %v1302, %v1555
    %v1656 = vadd.f32 %v1298, %v1551
    %v1657 = vadd.f32 %v1294, %v1547
    %v1658 = vadd.f32 %v1290, %v1543
    %v1659 = vadd.f32 %v1286, %v1539
    %v1660 = vadd.f32 %v1282, %v1535
    %v1661 = vadd.f32 %v1278, %v1531
    %v1662 = vadd.f32 %v1274, %v1527
    %v1663 = vadd.f32 %v1270, %v1523
    %v1664 = vadd.f32 %v1266, %v1519
    %v1665 = vadd.f32 %v1262, %v1515
    %v1666 = vadd.f32 %v1258, %v1511
    %v1667 = vadd.f32 %v1254, %v1507
    %v1668 = vadd.f32 %v1250, %v1503
    %v1669 = vadd.f32 %v1246, %v1499
    %v1670 = vadd.f32 %v1242, %v1495
    %v1671 = vadd.f32 %v1238, %v1491
    %v1672 = vadd.f32 %v1234, %v1487
    %v1673 = vadd.f32 %v1230, %v1483
    %v1674 = vadd.f32 %v1226, %v1479
    %v1675 = vadd.f32 %v1222, %v1475
    %v1676 = vadd.f32 %v1218, %v1471
    %v1677 = vadd.f32 %v1214, %v1467
    %v1678 = vadd.f32 %v1210, %v1463
    %v1679 = vadd.f32 %v1206, %v1459
    %v1680 = vadd.f32 %v1202, %v1583
    %v1681 = vadd.f32 %v1327, %v1580
    %v1682 = vadd.f32 %v1323, %v1576
    %v1683 = vadd.f32 %v1319, %v1572
    %v1684 = vadd.f32 %v1315, %v1568
    %v1685 = vadd.f32 %v1311, %v1564
    %v1686 = vadd.f32 %v1307, %v1560
    %v1687 = vadd.f32 %v1303, %v1556
    %v1688 = vadd.f32 %v1299, %v1552
    %v1689 = vadd.f32 %v1295, %v1548
    %v1690 = vadd.f32 %v1291, %v1544
    %v1691 = vadd.f32 %v1287, %v1540
    %v1692 = vadd.f32 %v1283, %v1536
    %v1693 = vadd.f32 %v1279, %v1532
    %v1694 = vadd.f32 %v1275, %v1528
    %v1695 = vadd.f32 %v1271, %v1524
    %v1696 = vadd.f32 %v1267, %v1520
    %v1697 = vadd.f32 %v1263, %v1516
    %v1698 = vadd.f32 %v1259, %v1512
    %v1699 = vadd.f32 %v1255, %v1508
    %v1700 = vadd.f32 %v1251, %v1504
    %v1701 = vadd.f32 %v1247, %v1500
    %v1702 = vadd.f32 %v1243, %v1496
    %v1703 = vadd.f32 %v1239, %v1492
    %v1704 = vadd.f32 %v1235, %v1488
    %v1705 = vadd.f32 %v1231, %v1484
    %v1706 = vadd.f32 %v1227, %v1480
    %v1707 = vadd.f32 %v1223, %v1476
    %v1708 = vadd.f32 %v1219, %v1472
    %v1709 = vadd.f32 %v1215, %v1468
    %v1710 = vadd.f32 %v1211, %v1464
    %v1711 = vadd.f32 %v1207, %v1460
    %v1712 = vadd.f32 %v1203, %v1584
    %v1713 = vadd.f32 %v941, %v1585
    %v1714 = vadd.f32 %v942, %v1586
    %v1715 = vadd.f32 %v943, %v1587
    %v1716 = vadd.f32 %v944, %v1588
    %v1717 = vadd.f32 %v945, %v1589
    %v1718 = vadd.f32 %v946, %v1590
    %v1719 = vadd.f32 %v947, %v1591
    %v1720 = vadd.f32 %v948, %v1592
    %v1721 = vadd.f32 %v949, %v1593
    %v1722 = vadd.f32 %v950, %v1594
    %v1723 = vadd.f32 %v951, %v1595
    %v1724 = vadd.f32 %v952, %v1596
    %v1725 = vadd.f32 %v953, %v1597
    %v1726 = vadd.f32 %v954, %v1598
    %v1727 = vadd.f32 %v955, %v1599
    %v1728 = vadd.f32 %v956, %v1600
    %v1729 = vadd.f32 %v957, %v1601
    %v1730 = vadd.f32 %v958, %v1602
    %v1731 = vadd.f32 %v959, %v1603
    %v1732 = vadd.f32 %v960, %v1604
    %v1733 = vadd.f32 %v961, %v1605
    %v1734 = vadd.f32 %v962, %v1606
    %v1735 = vadd.f32 %v963, %v1607
    %v1736 = vadd.f32 %v964, %v1608
    %v1737 = vadd.f32 %v965, %v1609
    %v1738 = vadd.f32 %v966, %v1610
    %v1739 = vadd.f32 %v967, %v1611
    %v1740 = vadd.f32 %v968, %v1612
    %v1741 = vadd.f32 %v969, %v1613
    %v1742 = vadd.f32 %v970, %v1614
    %v1743 = vadd.f32 %v971, %v1615
    %v1744 = vadd.f32 %v972, %v1616
    %v1745 = vadd.f32 %v973, %v1617
    %v1746 = vadd.f32 %v974, %v1618
    %v1747 = vadd.f32 %v975, %v1619
    %v1748 = vadd.f32 %v976, %v1620
    %v1749 = vadd.f32 %v977, %v1621
    %v1750 = vadd.f32 %v978, %v1622
    %v1751 = vadd.f32 %v979, %v1623
    %v1752 = vadd.f32 %v980, %v1624
    %v1753 = vadd.f32 %v981, %v1625
    %v1754 = vadd.f32 %v982, %v1626
    %v1755 = vadd.f32 %v983, %v1627
    %v1756 = vadd.f32 %v984, %v1628
    %v1757 = vadd.f32 %v985, %v1629
    %v1758 = vadd.f32 %v986, %v1630
    %v1759 = vadd.f32 %v987, %v1631
    %v1760 = vadd.f32 %v988, %v1632
    %v1761 = vadd.f32 %v989, %v1633
    %v1762 = vadd.f32 %v990, %v1634
    %v1763 = vadd.f32 %v991, %v1635
    %v1764 = vadd.f32 %v992, %v1636
    %v1765 = vadd.f32 %v993, %v1637
    %v1766 = vadd.f32 %v994, %v1638
    %v1767 = vadd.f32 %v995, %v1639
    %v1768 = vadd.f32 %v996, %v1640
    %v1769 = vadd.f32 %v997, %v1641
    %v1770 = vadd.f32 %v998, %v1642
    %v1771 = vadd.f32 %v999, %v1643
    %v1772 = vadd.f32 %v1000, %v1644
    %v1773 = vadd.f32 %v1001, %v1645
    %v1774 = vadd.f32 %v1002, %v1646
    %v1775 = vadd.f32 %v1003, %v1647
    %v1776 = vadd.f32 %v1004, %v1648
    %v1777 = vadd.f32 %v1005, %v1649
    %v1778 = vadd.f32 %v1006, %v1650
    %v1779 = vadd.f32 %v1007, %v1651
    %v1780 = vadd.f32 %v1008, %v1652
    %v1781 = vadd.f32 %v1009, %v1653
    %v1782 = vadd.f32 %v1010, %v1654
    %v1783 = vadd.f32 %v1011, %v1655
    %v1784 = vadd.f32 %v1012, %v1656
    %v1785 = vadd.f32 %v1013, %v1657
    %v1786 = vadd.f32 %v1014, %v1658
    %v1787 = vadd.f32 %v1015, %v1659
    %v1788 = vadd.f32 %v1016, %v1660
    %v1789 = vadd.f32 %v1017, %v1661
    %v1790 = vadd.f32 %v1018, %v1662
    %v1791 = vadd.f32 %v1019, %v1663
    %v1792 = vadd.f32 %v1020, %v1664
    %v1793 = vadd.f32 %v1021, %v1665
    %v1794 = vadd.f32 %v1022, %v1666
    %v1795 = vadd.f32 %v1023, %v1667
    %v1796 = vadd.f32 %v1024, %v1668
    %v1797 = vadd.f32 %v1025, %v1669
    %v1798 = vadd.f32 %v1026, %v1670
    %v1799 = vadd.f32 %v1027, %v1671
    %v1800 = vadd.f32 %v1028, %v1672
    %v1801 = vadd.f32 %v1029, %v1673
    %v1802 = vadd.f32 %v1030, %v1674
    %v1803 = vadd.f32 %v1031, %v1675
    %v1804 = vadd.f32 %v1032, %v1676
    %v1805 = vadd.f32 %v1033, %v1677
    %v1806 = vadd.f32 %v1034, %v1678
    %v1807 = vadd.f32 %v1035, %v1679
    %v1808 = vadd.f32 %v1036, %v1680
    %v1809 = vadd.f32 %v1037, %v1681
    %v1810 = vadd.f32 %v1038, %v1682
    %v1811 = vadd.f32 %v1039, %v1683
    %v1812 = vadd.f32 %v1040, %v1684
    %v1813 = vadd.f32 %v1041, %v1685
    %v1814 = vadd.f32 %v1042, %v1686
    %v1815 = vadd.f32 %v1043, %v1687
    %v1816 = vadd.f32 %v1044, %v1688
    %v1817 = vadd.f32 %v1045, %v1689
    %v1818 = vadd.f32 %v1046, %v1690
    %v1819 = vadd.f32 %v1047, %v1691
    %v1820 = vadd.f32 %v1048, %v1692
    %v1821 = vadd.f32 %v1049, %v1693
    %v1822 = vadd.f32 %v1050, %v1694
    %v1823 = vadd.f32 %v1051, %v1695
    %v1824 = vadd.f32 %v1052, %v1696
    %v1825 = vadd.f32 %v1053, %v1697
    %v1826 = vadd.f32 %v1054, %v1698
    %v1827 = vadd.f32 %v1055, %v1699
    %v1828 = vadd.f32 %v1056, %v1700
    %v1829 = vadd.f32 %v1057, %v1701
    %v1830 = vadd.f32 %v1058, %v1702
    %v1831 = vadd.f32 %v1059, %v1703
    %v1832 = vadd.f32 %v1060, %v1704
    %v1833 = vadd.f32 %v1061, %v1705
    %v1834 = vadd.f32 %v1062, %v1706
    %v1835 = vadd.f32 %v1063, %v1707
    %v1836 = vadd.f32 %v1064, %v1708
    %v1837 = vadd.f32 %v1065, %v1709
    %v1838 = vadd.f32 %v1066, %v1710
    %v1839 = vadd.f32 %v1067, %v1711
    %v1840 = vadd.f32 %v1068, %v1712
    %v1841 = vld [vmem:[%s3] sm:$0xff]
    %v1842 = vld [vmem:[%s3 + $0x8] sm:$0xff]
    %v1843 = vld [vmem:[%s3 + $0x10] sm:$0xff]
    %v1844 = vld [vmem:[%s3 + $0x18] sm:$0xff]
    %v1845 = vld [vmem:[%s3 + $0x20] sm:$0xff]
    %v1846 = vld [vmem:[%s3 + $0x28] sm:$0xff]
    %v1847 = vld [vmem:[%s3 + $0x30] sm:$0xff]
    %v1848 = vld [vmem:[%s3 + $0x38] sm:$0xff]
    %v1849 = vld [vmem:[%s3 + $0x40] sm:$0xff]
    %v1850 = vld [vmem:[%s3 + $0x48] sm:$0xff]
    %v1851 = vld [vmem:[%s3 + $0x50] sm:$0xff]
    %v1852 = vld [vmem:[%s3 + $0x58] sm:$0xff]
    %v1853 = vld [vmem:[%s3 + $0x60] sm:$0xff]
    %v1854 = vld [vmem:[%s3 + $0x68] sm:$0xff]
    %v1855 = vld [vmem:[%s3 + $0x70] sm:$0xff]
    %v1856 = vld [vmem:[%s3 + $0x78] sm:$0xff]
    %v1857 = vld [vmem:[%s4] sm:$0x1]
    %v1859 = vperm.slane %v1857, 0
    %1861 = vmatpush.msra.mxu0 %v1856
    %1862 = vmatpush.msra.mxu0 %v1855
    %1863 = vmatpush.msra.mxu0 %v1854
    %1864 = vmatpush.msra.mxu0 %v1853
    %1865 = vmatpush.msra.mxu0 %v1852
    %1866 = vmatpush.msra.mxu0 %v1851
    %1867 = vmatpush.msra.mxu0 %v1850
    %1868 = vmatpush.msra.mxu0 %v1849
    %1869 = vmatpush.msra.mxu0 %v1848
    %1870 = vmatpush.msra.mxu0 %v1847
    %1871 = vmatpush.msra.mxu0 %v1846
    %1872 = vmatpush.msra.mxu0 %v1845
    %1873 = vmatpush.msra.mxu0 %v1844
    %1874 = vmatpush.msra.mxu0 %v1843
    %1875 = vmatpush.msra.mxu0 %v1842
    %1876 = vmatpush.msra.mxu0 %v1841
    %1877 = vmatmul.f32.gmra.mxu0 %v1713
    %v1878 = vpop.f32.mrf.mxu0
    %v1879 = vadd.f32 %v1859, %v1878
    %1880 = vmatmul.f32.gmra.mxu0 %v1714
    %v1881 = vpop.f32.mrf.mxu0
    %v1882 = vadd.f32 %v1859, %v1881
    %1883 = vmatmul.f32.gmra.mxu0 %v1715
    %v1884 = vpop.f32.mrf.mxu0
    %v1885 = vadd.f32 %v1859, %v1884
    %1886 = vmatmul.f32.gmra.mxu0 %v1716
    %v1887 = vpop.f32.mrf.mxu0
    %v1888 = vadd.f32 %v1859, %v1887
    %1889 = vmatmul.f32.gmra.mxu0 %v1717
    %v1890 = vpop.f32.mrf.mxu0
    %v1891 = vadd.f32 %v1859, %v1890
    %1892 = vmatmul.f32.gmra.mxu0 %v1718
    %v1893 = vpop.f32.mrf.mxu0
    %v1894 = vadd.f32 %v1859, %v1893
    %1895 = vmatmul.f32.gmra.mxu0 %v1719
    %v1896 = vpop.f32.mrf.mxu0
    %v1897 = vadd.f32 %v1859, %v1896
    %1898 = vmatmul.f32.gmra.mxu0 %v1720
    %v1899 = vpop.f32.mrf.mxu0
    %v1900 = vadd.f32 %v1859, %v1899
    %1901 = vmatmul.f32.gmra.mxu0 %v1721
    %v1902 = vpop.f32.mrf.mxu0
    %v1903 = vadd.f32 %v1859, %v1902
    %1904 = vmatmul.f32.gmra.mxu0 %v1722
    %v1905 = vpop.f32.mrf.mxu0
    %v1906 = vadd.f32 %v1859, %v1905
    %1907 = vmatmul.f32.gmra.mxu0 %v1723
    %v1908 = vpop.f32.mrf.mxu0
    %v1909 = vadd.f32 %v1859, %v1908
    %1910 = vmatmul.f32.gmra.mxu0 %v1724
    %v1911 = vpop.f32.mrf.mxu0
    %v1912 = vadd.f32 %v1859, %v1911
    %1913 = vmatmul.f32.gmra.mxu0 %v1725
    %v1914 = vpop.f32.mrf.mxu0
    %v1915 = vadd.f32 %v1859, %v1914
    %1916 = vmatmul.f32.gmra.mxu0 %v1726
    %v1917 = vpop.f32.mrf.mxu0
    %v1918 = vadd.f32 %v1859, %v1917
    %1919 = vmatmul.f32.gmra.mxu0 %v1727
    %v1920 = vpop.f32.mrf.mxu0
    %v1921 = vadd.f32 %v1859, %v1920
    %1922 = vmatmul.f32.gmra.mxu0 %v1728
    %v1923 = vpop.f32.mrf.mxu0
    %v1924 = vadd.f32 %v1859, %v1923
    %1925 = vmatmul.f32.gmra.mxu0 %v1729
    %v1926 = vpop.f32.mrf.mxu0
    %v1927 = vadd.f32 %v1859, %v1926
    %1928 = vmatmul.f32.gmra.mxu0 %v1730
    %v1929 = vpop.f32.mrf.mxu0
    %v1930 = vadd.f32 %v1859, %v1929
    %1931 = vmatmul.f32.gmra.mxu0 %v1731
    %v1932 = vpop.f32.mrf.mxu0
    %v1933 = vadd.f32 %v1859, %v1932
    %1934 = vmatmul.f32.gmra.mxu0 %v1732
    %v1935 = vpop.f32.mrf.mxu0
    %v1936 = vadd.f32 %v1859, %v1935
    %1937 = vmatmul.f32.gmra.mxu0 %v1733
    %v1938 = vpop.f32.mrf.mxu0
    %v1939 = vadd.f32 %v1859, %v1938
    %1940 = vmatmul.f32.gmra.mxu0 %v1734
    %v1941 = vpop.f32.mrf.mxu0
    %v1942 = vadd.f32 %v1859, %v1941
    %1943 = vmatmul.f32.gmra.mxu0 %v1735
    %v1944 = vpop.f32.mrf.mxu0
    %v1945 = vadd.f32 %v1859, %v1944
    %1946 = vmatmul.f32.gmra.mxu0 %v1736
    %v1947 = vpop.f32.mrf.mxu0
    %v1948 = vadd.f32 %v1859, %v1947
    %1949 = vmatmul.f32.gmra.mxu0 %v1737
    %v1950 = vpop.f32.mrf.mxu0
    %v1951 = vadd.f32 %v1859, %v1950
    %1952 = vmatmul.f32.gmra.mxu0 %v1738
    %v1953 = vpop.f32.mrf.mxu0
    %v1954 = vadd.f32 %v1859, %v1953
    %1955 = vmatmul.f32.gmra.mxu0 %v1739
    %v1956 = vpop.f32.mrf.mxu0
    %v1957 = vadd.f32 %v1859, %v1956
    %1958 = vmatmul.f32.gmra.mxu0 %v1740
    %v1959 = vpop.f32.mrf.mxu0
    %v1960 = vadd.f32 %v1859, %v1959
    %1961 = vmatmul.f32.gmra.mxu0 %v1741
    %v1962 = vpop.f32.mrf.mxu0
    %v1963 = vadd.f32 %v1859, %v1962
    %1964 = vmatmul.f32.gmra.mxu0 %v1742
    %v1965 = vpop.f32.mrf.mxu0
    %v1966 = vadd.f32 %v1859, %v1965
    %1967 = vmatmul.f32.gmra.mxu0 %v1743
    %v1968 = vpop.f32.mrf.mxu0
    %v1969 = vadd.f32 %v1859, %v1968
    %1970 = vmatmul.f32.gmra.mxu0 %v1744
    %v1971 = vpop.f32.mrf.mxu0
    %v1972 = vadd.f32 %v1859, %v1971
    %1973 = vmatmul.f32.gmra.mxu0 %v1745
    %v1974 = vpop.f32.mrf.mxu0
    %v1975 = vadd.f32 %v1859, %v1974
    %1976 = vmatmul.f32.gmra.mxu0 %v1746
    %v1977 = vpop.f32.mrf.mxu0
    %v1978 = vadd.f32 %v1859, %v1977
    %1979 = vmatmul.f32.gmra.mxu0 %v1747
    %v1980 = vpop.f32.mrf.mxu0
    %v1981 = vadd.f32 %v1859, %v1980
    %1982 = vmatmul.f32.gmra.mxu0 %v1748
    %v1983 = vpop.f32.mrf.mxu0
    %v1984 = vadd.f32 %v1859, %v1983
    %1985 = vmatmul.f32.gmra.mxu0 %v1749
    %v1986 = vpop.f32.mrf.mxu0
    %v1987 = vadd.f32 %v1859, %v1986
    %1988 = vmatmul.f32.gmra.mxu0 %v1750
    %v1989 = vpop.f32.mrf.mxu0
    %v1990 = vadd.f32 %v1859, %v1989
    %1991 = vmatmul.f32.gmra.mxu0 %v1751
    %v1992 = vpop.f32.mrf.mxu0
    %v1993 = vadd.f32 %v1859, %v1992
    %1994 = vmatmul.f32.gmra.mxu0 %v1752
    %v1995 = vpop.f32.mrf.mxu0
    %v1996 = vadd.f32 %v1859, %v1995
    %1997 = vmatmul.f32.gmra.mxu0 %v1753
    %v1998 = vpop.f32.mrf.mxu0
    %v1999 = vadd.f32 %v1859, %v1998
    %2000 = vmatmul.f32.gmra.mxu0 %v1754
    %v2001 = vpop.f32.mrf.mxu0
    %v2002 = vadd.f32 %v1859, %v2001
    %2003 = vmatmul.f32.gmra.mxu0 %v1755
    %v2004 = vpop.f32.mrf.mxu0
    %v2005 = vadd.f32 %v1859, %v2004
    %2006 = vmatmul.f32.gmra.mxu0 %v1756
    %v2007 = vpop.f32.mrf.mxu0
    %v2008 = vadd.f32 %v1859, %v2007
    %2009 = vmatmul.f32.gmra.mxu0 %v1757
    %v2010 = vpop.f32.mrf.mxu0
    %v2011 = vadd.f32 %v1859, %v2010
    %2012 = vmatmul.f32.gmra.mxu0 %v1758
    %v2013 = vpop.f32.mrf.mxu0
    %v2014 = vadd.f32 %v1859, %v2013
    %2015 = vmatmul.f32.gmra.mxu0 %v1759
    %v2016 = vpop.f32.mrf.mxu0
    %v2017 = vadd.f32 %v1859, %v2016
    %2018 = vmatmul.f32.gmra.mxu0 %v1760
    %v2019 = vpop.f32.mrf.mxu0
    %v2020 = vadd.f32 %v1859, %v2019
    %2021 = vmatmul.f32.gmra.mxu0 %v1761
    %v2022 = vpop.f32.mrf.mxu0
    %v2023 = vadd.f32 %v1859, %v2022
    %2024 = vmatmul.f32.gmra.mxu0 %v1762
    %v2025 = vpop.f32.mrf.mxu0
    %v2026 = vadd.f32 %v1859, %v2025
    %2027 = vmatmul.f32.gmra.mxu0 %v1763
    %v2028 = vpop.f32.mrf.mxu0
    %v2029 = vadd.f32 %v1859, %v2028
    %2030 = vmatmul.f32.gmra.mxu0 %v1764
    %v2031 = vpop.f32.mrf.mxu0
    %v2032 = vadd.f32 %v1859, %v2031
    %2033 = vmatmul.f32.gmra.mxu0 %v1765
    %v2034 = vpop.f32.mrf.mxu0
    %v2035 = vadd.f32 %v1859, %v2034
    %2036 = vmatmul.f32.gmra.mxu0 %v1766
    %v2037 = vpop.f32.mrf.mxu0
    %v2038 = vadd.f32 %v1859, %v2037
    %2039 = vmatmul.f32.gmra.mxu0 %v1767
    %v2040 = vpop.f32.mrf.mxu0
    %v2041 = vadd.f32 %v1859, %v2040
    %2042 = vmatmul.f32.gmra.mxu0 %v1768
    %v2043 = vpop.f32.mrf.mxu0
    %v2044 = vadd.f32 %v1859, %v2043
    %2045 = vmatmul.f32.gmra.mxu0 %v1769
    %v2046 = vpop.f32.mrf.mxu0
    %v2047 = vadd.f32 %v1859, %v2046
    %2048 = vmatmul.f32.gmra.mxu0 %v1770
    %v2049 = vpop.f32.mrf.mxu0
    %v2050 = vadd.f32 %v1859, %v2049
    %2051 = vmatmul.f32.gmra.mxu0 %v1771
    %v2052 = vpop.f32.mrf.mxu0
    %v2053 = vadd.f32 %v1859, %v2052
    %2054 = vmatmul.f32.gmra.mxu0 %v1772
    %v2055 = vpop.f32.mrf.mxu0
    %v2056 = vadd.f32 %v1859, %v2055
    %2057 = vmatmul.f32.gmra.mxu0 %v1773
    %v2058 = vpop.f32.mrf.mxu0
    %v2059 = vadd.f32 %v1859, %v2058
    %2060 = vmatmul.f32.gmra.mxu0 %v1774
    %v2061 = vpop.f32.mrf.mxu0
    %v2062 = vadd.f32 %v1859, %v2061
    %2063 = vmatmul.f32.gmra.mxu0 %v1775
    %v2064 = vpop.f32.mrf.mxu0
    %v2065 = vadd.f32 %v1859, %v2064
    %2066 = vmatmul.f32.gmra.mxu0 %v1776
    %v2067 = vpop.f32.mrf.mxu0
    %v2068 = vadd.f32 %v1859, %v2067
    %2069 = vmatmul.f32.gmra.mxu0 %v1777
    %v2070 = vpop.f32.mrf.mxu0
    %v2071 = vadd.f32 %v1859, %v2070
    %2072 = vmatmul.f32.gmra.mxu0 %v1778
    %v2073 = vpop.f32.mrf.mxu0
    %v2074 = vadd.f32 %v1859, %v2073
    %2075 = vmatmul.f32.gmra.mxu0 %v1779
    %v2076 = vpop.f32.mrf.mxu0
    %v2077 = vadd.f32 %v1859, %v2076
    %2078 = vmatmul.f32.gmra.mxu0 %v1780
    %v2079 = vpop.f32.mrf.mxu0
    %v2080 = vadd.f32 %v1859, %v2079
    %2081 = vmatmul.f32.gmra.mxu0 %v1781
    %v2082 = vpop.f32.mrf.mxu0
    %v2083 = vadd.f32 %v1859, %v2082
    %2084 = vmatmul.f32.gmra.mxu0 %v1782
    %v2085 = vpop.f32.mrf.mxu0
    %v2086 = vadd.f32 %v1859, %v2085
    %2087 = vmatmul.f32.gmra.mxu0 %v1783
    %v2088 = vpop.f32.mrf.mxu0
    %v2089 = vadd.f32 %v1859, %v2088
    %2090 = vmatmul.f32.gmra.mxu0 %v1784
    %v2091 = vpop.f32.mrf.mxu0
    %v2092 = vadd.f32 %v1859, %v2091
    %2093 = vmatmul.f32.gmra.mxu0 %v1785
    %v2094 = vpop.f32.mrf.mxu0
    %v2095 = vadd.f32 %v1859, %v2094
    %2096 = vmatmul.f32.gmra.mxu0 %v1786
    %v2097 = vpop.f32.mrf.mxu0
    %v2098 = vadd.f32 %v1859, %v2097
    %2099 = vmatmul.f32.gmra.mxu0 %v1787
    %v2100 = vpop.f32.mrf.mxu0
    %v2101 = vadd.f32 %v1859, %v2100
    %2102 = vmatmul.f32.gmra.mxu0 %v1788
    %v2103 = vpop.f32.mrf.mxu0
    %v2104 = vadd.f32 %v1859, %v2103
    %2105 = vmatmul.f32.gmra.mxu0 %v1789
    %v2106 = vpop.f32.mrf.mxu0
    %v2107 = vadd.f32 %v1859, %v2106
    %2108 = vmatmul.f32.gmra.mxu0 %v1790
    %v2109 = vpop.f32.mrf.mxu0
    %v2110 = vadd.f32 %v1859, %v2109
    %2111 = vmatmul.f32.gmra.mxu0 %v1791
    %v2112 = vpop.f32.mrf.mxu0
    %v2113 = vadd.f32 %v1859, %v2112
    %2114 = vmatmul.f32.gmra.mxu0 %v1792
    %v2115 = vpop.f32.mrf.mxu0
    %v2116 = vadd.f32 %v1859, %v2115
    %2117 = vmatmul.f32.gmra.mxu0 %v1793
    %v2118 = vpop.f32.mrf.mxu0
    %v2119 = vadd.f32 %v1859, %v2118
    %2120 = vmatmul.f32.gmra.mxu0 %v1794
    %v2121 = vpop.f32.mrf.mxu0
    %v2122 = vadd.f32 %v1859, %v2121
    %2123 = vmatmul.f32.gmra.mxu0 %v1795
    %v2124 = vpop.f32.mrf.mxu0
    %v2125 = vadd.f32 %v1859, %v2124
    %2126 = vmatmul.f32.gmra.mxu0 %v1796
    %v2127 = vpop.f32.mrf.mxu0
    %v2128 = vadd.f32 %v1859, %v2127
    %2129 = vmatmul.f32.gmra.mxu0 %v1797
    %v2130 = vpop.f32.mrf.mxu0
    %v2131 = vadd.f32 %v1859, %v2130
    %2132 = vmatmul.f32.gmra.mxu0 %v1798
    %v2133 = vpop.f32.mrf.mxu0
    %v2134 = vadd.f32 %v1859, %v2133
    %2135 = vmatmul.f32.gmra.mxu0 %v1799
    %v2136 = vpop.f32.mrf.mxu0
    %v2137 = vadd.f32 %v1859, %v2136
    %2138 = vmatmul.f32.gmra.mxu0 %v1800
    %v2139 = vpop.f32.mrf.mxu0
    %v2140 = vadd.f32 %v1859, %v2139
    %2141 = vmatmul.f32.gmra.mxu0 %v1801
    %v2142 = vpop.f32.mrf.mxu0
    %v2143 = vadd.f32 %v1859, %v2142
    %2144 = vmatmul.f32.gmra.mxu0 %v1802
    %v2145 = vpop.f32.mrf.mxu0
    %v2146 = vadd.f32 %v1859, %v2145
    %2147 = vmatmul.f32.gmra.mxu0 %v1803
    %v2148 = vpop.f32.mrf.mxu0
    %v2149 = vadd.f32 %v1859, %v2148
    %2150 = vmatmul.f32.gmra.mxu0 %v1804
    %v2151 = vpop.f32.mrf.mxu0
    %v2152 = vadd.f32 %v1859, %v2151
    %2153 = vmatmul.f32.gmra.mxu0 %v1805
    %v2154 = vpop.f32.mrf.mxu0
    %v2155 = vadd.f32 %v1859, %v2154
    %2156 = vmatmul.f32.gmra.mxu0 %v1806
    %v2157 = vpop.f32.mrf.mxu0
    %v2158 = vadd.f32 %v1859, %v2157
    %2159 = vmatmul.f32.gmra.mxu0 %v1807
    %v2160 = vpop.f32.mrf.mxu0
    %v2161 = vadd.f32 %v1859, %v2160
    %2162 = vmatmul.f32.gmra.mxu0 %v1808
    %v2163 = vpop.f32.mrf.mxu0
    %v2164 = vadd.f32 %v1859, %v2163
    %2165 = vmatmul.f32.gmra.mxu0 %v1809
    %v2166 = vpop.f32.mrf.mxu0
    %v2167 = vadd.f32 %v1859, %v2166
    %2168 = vmatmul.f32.gmra.mxu0 %v1810
    %v2169 = vpop.f32.mrf.mxu0
    %v2170 = vadd.f32 %v1859, %v2169
    %2171 = vmatmul.f32.gmra.mxu0 %v1811
    %v2172 = vpop.f32.mrf.mxu0
    %v2173 = vadd.f32 %v1859, %v2172
    %2174 = vmatmul.f32.gmra.mxu0 %v1812
    %v2175 = vpop.f32.mrf.mxu0
    %v2176 = vadd.f32 %v1859, %v2175
    %2177 = vmatmul.f32.gmra.mxu0 %v1813
    %v2178 = vpop.f32.mrf.mxu0
    %v2179 = vadd.f32 %v1859, %v2178
    %2180 = vmatmul.f32.gmra.mxu0 %v1814
    %v2181 = vpop.f32.mrf.mxu0
    %v2182 = vadd.f32 %v1859, %v2181
    %2183 = vmatmul.f32.gmra.mxu0 %v1815
    %v2184 = vpop.f32.mrf.mxu0
    %v2185 = vadd.f32 %v1859, %v2184
    %2186 = vmatmul.f32.gmra.mxu0 %v1816
    %v2187 = vpop.f32.mrf.mxu0
    %v2188 = vadd.f32 %v1859, %v2187
    %2189 = vmatmul.f32.gmra.mxu0 %v1817
    %v2190 = vpop.f32.mrf.mxu0
    %v2191 = vadd.f32 %v1859, %v2190
    %2192 = vmatmul.f32.gmra.mxu0 %v1818
    %v2193 = vpop.f32.mrf.mxu0
    %v2194 = vadd.f32 %v1859, %v2193
    %2195 = vmatmul.f32.gmra.mxu0 %v1819
    %v2196 = vpop.f32.mrf.mxu0
    %v2197 = vadd.f32 %v1859, %v2196
    %2198 = vmatmul.f32.gmra.mxu0 %v1820
    %v2199 = vpop.f32.mrf.mxu0
    %v2200 = vadd.f32 %v1859, %v2199
    %2201 = vmatmul.f32.gmra.mxu0 %v1821
    %v2202 = vpop.f32.mrf.mxu0
    %v2203 = vadd.f32 %v1859, %v2202
    %2204 = vmatmul.f32.gmra.mxu0 %v1822
    %v2205 = vpop.f32.mrf.mxu0
    %v2206 = vadd.f32 %v1859, %v2205
    %2207 = vmatmul.f32.gmra.mxu0 %v1823
    %v2208 = vpop.f32.mrf.mxu0
    %v2209 = vadd.f32 %v1859, %v2208
    %2210 = vmatmul.f32.gmra.mxu0 %v1824
    %v2211 = vpop.f32.mrf.mxu0
    %v2212 = vadd.f32 %v1859, %v2211
    %2213 = vmatmul.f32.gmra.mxu0 %v1825
    %v2214 = vpop.f32.mrf.mxu0
    %v2215 = vadd.f32 %v1859, %v2214
    %2216 = vmatmul.f32.gmra.mxu0 %v1826
    %v2217 = vpop.f32.mrf.mxu0
    %v2218 = vadd.f32 %v1859, %v2217
    %2219 = vmatmul.f32.gmra.mxu0 %v1827
    %v2220 = vpop.f32.mrf.mxu0
    %v2221 = vadd.f32 %v1859, %v2220
    %2222 = vmatmul.f32.gmra.mxu0 %v1828
    %v2223 = vpop.f32.mrf.mxu0
    %v2224 = vadd.f32 %v1859, %v2223
    %2225 = vmatmul.f32.gmra.mxu0 %v1829
    %v2226 = vpop.f32.mrf.mxu0
    %v2227 = vadd.f32 %v1859, %v2226
    %2228 = vmatmul.f32.gmra.mxu0 %v1830
    %v2229 = vpop.f32.mrf.mxu0
    %v2230 = vadd.f32 %v1859, %v2229
    %2231 = vmatmul.f32.gmra.mxu0 %v1831
    %v2232 = vpop.f32.mrf.mxu0
    %v2233 = vadd.f32 %v1859, %v2232
    %2234 = vmatmul.f32.gmra.mxu0 %v1832
    %v2235 = vpop.f32.mrf.mxu0
    %v2236 = vadd.f32 %v1859, %v2235
    %2237 = vmatmul.f32.gmra.mxu0 %v1833
    %v2238 = vpop.f32.mrf.mxu0
    %v2239 = vadd.f32 %v1859, %v2238
    %2240 = vmatmul.f32.gmra.mxu0 %v1834
    %v2241 = vpop.f32.mrf.mxu0
    %v2242 = vadd.f32 %v1859, %v2241
    %2243 = vmatmul.f32.gmra.mxu0 %v1835
    %v2244 = vpop.f32.mrf.mxu0
    %v2245 = vadd.f32 %v1859, %v2244
    %2246 = vmatmul.f32.gmra.mxu0 %v1836
    %v2247 = vpop.f32.mrf.mxu0
    %v2248 = vadd.f32 %v1859, %v2247
    %2249 = vmatmul.f32.gmra.mxu0 %v1837
    %v2250 = vpop.f32.mrf.mxu0
    %v2251 = vadd.f32 %v1859, %v2250
    %2252 = vmatmul.f32.gmra.mxu0 %v1838
    %v2253 = vpop.f32.mrf.mxu0
    %v2254 = vadd.f32 %v1859, %v2253
    %2255 = vmatmul.f32.gmra.mxu0 %v1839
    %v2256 = vpop.f32.mrf.mxu0
    %v2257 = vadd.f32 %v1859, %v2256
    %2258 = vmatmul.f32.gmra.mxu0 %v1840
    %v2259 = vpop.f32.mrf.mxu0
    %v2260 = vadd.f32 %v1859, %v2259
    %2261 = vdwg.mxu0
    %v2262 = vmax.f32 %v1879, 0.0
    %v2263 = vmax.f32 %v1882, 0.0
    %v2264 = vmax.f32 %v1885, 0.0
    %v2265 = vmax.f32 %v1888, 0.0
    %v2266 = vmax.f32 %v1891, 0.0
    %v2267 = vmax.f32 %v1894, 0.0
    %v2268 = vmax.f32 %v1897, 0.0
    %v2269 = vmax.f32 %v1900, 0.0
    %v2270 = vmax.f32 %v1903, 0.0
    %v2271 = vmax.f32 %v1906, 0.0
    %v2272 = vmax.f32 %v1909, 0.0
    %v2273 = vmax.f32 %v1912, 0.0
    %v2274 = vmax.f32 %v1915, 0.0
    %v2275 = vmax.f32 %v1918, 0.0
    %v2276 = vmax.f32 %v1921, 0.0
    %v2277 = vmax.f32 %v1924, 0.0
    %v2278 = vmax.f32 %v1927, 0.0
    %v2279 = vmax.f32 %v1930, 0.0
    %v2280 = vmax.f32 %v1933, 0.0
    %v2281 = vmax.f32 %v1936, 0.0
    %v2282 = vmax.f32 %v1939, 0.0
    %v2283 = vmax.f32 %v1942, 0.0
    %v2284 = vmax.f32 %v1945, 0.0
    %v2285 = vmax.f32 %v1948, 0.0
    %v2286 = vmax.f32 %v1951, 0.0
    %v2287 = vmax.f32 %v1954, 0.0
    %v2288 = vmax.f32 %v1957, 0.0
    %v2289 = vmax.f32 %v1960, 0.0
    %v2290 = vmax.f32 %v1963, 0.0
    %v2291 = vmax.f32 %v1966, 0.0
    %v2292 = vmax.f32 %v1969, 0.0
    %v2293 = vmax.f32 %v1972, 0.0
    %v2294 = vmax.f32 %v1975, 0.0
    %v2295 = vmax.f32 %v1978, 0.0
    %v2296 = vmax.f32 %v1981, 0.0
    %v2297 = vmax.f32 %v1984, 0.0
    %v2298 = vmax.f32 %v1987, 0.0
    %v2299 = vmax.f32 %v1990, 0.0
    %v2300 = vmax.f32 %v1993, 0.0
    %v2301 = vmax.f32 %v1996, 0.0
    %v2302 = vmax.f32 %v1999, 0.0
    %v2303 = vmax.f32 %v2002, 0.0
    %v2304 = vmax.f32 %v2005, 0.0
    %v2305 = vmax.f32 %v2008, 0.0
    %v2306 = vmax.f32 %v2011, 0.0
    %v2307 = vmax.f32 %v2014, 0.0
    %v2308 = vmax.f32 %v2017, 0.0
    %v2309 = vmax.f32 %v2020, 0.0
    %v2310 = vmax.f32 %v2023, 0.0
    %v2311 = vmax.f32 %v2026, 0.0
    %v2312 = vmax.f32 %v2029, 0.0
    %v2313 = vmax.f32 %v2032, 0.0
    %v2314 = vmax.f32 %v2035, 0.0
    %v2315 = vmax.f32 %v2038, 0.0
    %v2316 = vmax.f32 %v2041, 0.0
    %v2317 = vmax.f32 %v2044, 0.0
    %v2318 = vmax.f32 %v2047, 0.0
    %v2319 = vmax.f32 %v2050, 0.0
    %v2320 = vmax.f32 %v2053, 0.0
    %v2321 = vmax.f32 %v2056, 0.0
    %v2322 = vmax.f32 %v2059, 0.0
    %v2323 = vmax.f32 %v2062, 0.0
    %v2324 = vmax.f32 %v2065, 0.0
    %v2325 = vmax.f32 %v2068, 0.0
    %v2326 = vmax.f32 %v2071, 0.0
    %v2327 = vmax.f32 %v2074, 0.0
    %v2328 = vmax.f32 %v2077, 0.0
    %v2329 = vmax.f32 %v2080, 0.0
    %v2330 = vmax.f32 %v2083, 0.0
    %v2331 = vmax.f32 %v2086, 0.0
    %v2332 = vmax.f32 %v2089, 0.0
    %v2333 = vmax.f32 %v2092, 0.0
    %v2334 = vmax.f32 %v2095, 0.0
    %v2335 = vmax.f32 %v2098, 0.0
    %v2336 = vmax.f32 %v2101, 0.0
    %v2337 = vmax.f32 %v2104, 0.0
    %v2338 = vmax.f32 %v2107, 0.0
    %v2339 = vmax.f32 %v2110, 0.0
    %v2340 = vmax.f32 %v2113, 0.0
    %v2341 = vmax.f32 %v2116, 0.0
    %v2342 = vmax.f32 %v2119, 0.0
    %v2343 = vmax.f32 %v2122, 0.0
    %v2344 = vmax.f32 %v2125, 0.0
    %v2345 = vmax.f32 %v2128, 0.0
    %v2346 = vmax.f32 %v2131, 0.0
    %v2347 = vmax.f32 %v2134, 0.0
    %v2348 = vmax.f32 %v2137, 0.0
    %v2349 = vmax.f32 %v2140, 0.0
    %v2350 = vmax.f32 %v2143, 0.0
    %v2351 = vmax.f32 %v2146, 0.0
    %v2352 = vmax.f32 %v2149, 0.0
    %v2353 = vmax.f32 %v2152, 0.0
    %v2354 = vmax.f32 %v2155, 0.0
    %v2355 = vmax.f32 %v2158, 0.0
    %v2356 = vmax.f32 %v2161, 0.0
    %v2357 = vmax.f32 %v2164, 0.0
    %v2358 = vmax.f32 %v2167, 0.0
    %v2359 = vmax.f32 %v2170, 0.0
    %v2360 = vmax.f32 %v2173, 0.0
    %v2361 = vmax.f32 %v2176, 0.0
    %v2362 = vmax.f32 %v2179, 0.0
    %v2363 = vmax.f32 %v2182, 0.0
    %v2364 = vmax.f32 %v2185, 0.0
    %v2365 = vmax.f32 %v2188, 0.0
    %v2366 = vmax.f32 %v2191, 0.0
    %v2367 = vmax.f32 %v2194, 0.0
    %v2368 = vmax.f32 %v2197, 0.0
    %v2369 = vmax.f32 %v2200, 0.0
    %v2370 = vmax.f32 %v2203, 0.0
    %v2371 = vmax.f32 %v2206, 0.0
    %v2372 = vmax.f32 %v2209, 0.0
    %v2373 = vmax.f32 %v2212, 0.0
    %v2374 = vmax.f32 %v2215, 0.0
    %v2375 = vmax.f32 %v2218, 0.0
    %v2376 = vmax.f32 %v2221, 0.0
    %v2377 = vmax.f32 %v2224, 0.0
    %v2378 = vmax.f32 %v2227, 0.0
    %v2379 = vmax.f32 %v2230, 0.0
    %v2380 = vmax.f32 %v2233, 0.0
    %v2381 = vmax.f32 %v2236, 0.0
    %v2382 = vmax.f32 %v2239, 0.0
    %v2383 = vmax.f32 %v2242, 0.0
    %v2384 = vmax.f32 %v2245, 0.0
    %v2385 = vmax.f32 %v2248, 0.0
    %v2386 = vmax.f32 %v2251, 0.0
    %v2387 = vmax.f32 %v2254, 0.0
    %v2388 = vmax.f32 %v2257, 0.0
    %v2389 = vmax.f32 %v2260, 0.0
    %2390 = vst [vmem:[#allocation2] sm:$0xff] %v2262
    %2391 = vst [vmem:[#allocation2 + $0x8] sm:$0xff] %v2263
    %2392 = vst [vmem:[#allocation2 + $0x10] sm:$0xff] %v2264
    %2393 = vst [vmem:[#allocation2 + $0x18] sm:$0xff] %v2265
    %2394 = vst [vmem:[#allocation2 + $0x20] sm:$0xff] %v2266
    %2395 = vst [vmem:[#allocation2 + $0x28] sm:$0xff] %v2267
    %2396 = vst [vmem:[#allocation2 + $0x30] sm:$0xff] %v2268
    %2397 = vst [vmem:[#allocation2 + $0x38] sm:$0xff] %v2269
    %2398 = vst [vmem:[#allocation2 + $0x40] sm:$0xff] %v2270
    %2399 = vst [vmem:[#allocation2 + $0x48] sm:$0xff] %v2271
    %2400 = vst [vmem:[#allocation2 + $0x50] sm:$0xff] %v2272
    %2401 = vst [vmem:[#allocation2 + $0x58] sm:$0xff] %v2273
    %2402 = vst [vmem:[#allocation2 + $0x60] sm:$0xff] %v2274
    %2403 = vst [vmem:[#allocation2 + $0x68] sm:$0xff] %v2275
    %2404 = vst [vmem:[#allocation2 + $0x70] sm:$0xff] %v2276
    %2405 = vst [vmem:[#allocation2 + $0x78] sm:$0xff] %v2277
    %2406 = vst [vmem:[#allocation2 + $0x80] sm:$0xff] %v2278
    %2407 = vst [vmem:[#allocation2 + $0x88] sm:$0xff] %v2279
    %2408 = vst [vmem:[#allocation2 + $0x90] sm:$0xff] %v2280
    %2409 = vst [vmem:[#allocation2 + $0x98] sm:$0xff] %v2281
    %2410 = vst [vmem:[#allocation2 + $0xa0] sm:$0xff] %v2282
    %2411 = vst [vmem:[#allocation2 + $0xa8] sm:$0xff] %v2283
    %2412 = vst [vmem:[#allocation2 + $0xb0] sm:$0xff] %v2284
    %2413 = vst [vmem:[#allocation2 + $0xb8] sm:$0xff] %v2285
    %2414 = vst [vmem:[#allocation2 + $0xc0] sm:$0xff] %v2286
    %2415 = vst [vmem:[#allocation2 + $0xc8] sm:$0xff] %v2287
    %2416 = vst [vmem:[#allocation2 + $0xd0] sm:$0xff] %v2288
    %2417 = vst [vmem:[#allocation2 + $0xd8] sm:$0xff] %v2289
    %2418 = vst [vmem:[#allocation2 + $0xe0] sm:$0xff] %v2290
    %2419 = vst [vmem:[#allocation2 + $0xe8] sm:$0xff] %v2291
    %2420 = vst [vmem:[#allocation2 + $0xf0] sm:$0xff] %v2292
    %2421 = vst [vmem:[#allocation2 + $0xf8] sm:$0xff] %v2293
    %2422 = vst [vmem:[#allocation2 + $0x100] sm:$0xff] %v2294
    %2423 = vst [vmem:[#allocation2 + $0x108] sm:$0xff] %v2295
    %2424 = vst [vmem:[#allocation2 + $0x110] sm:$0xff] %v2296
    %2425 = vst [vmem:[#allocation2 + $0x118] sm:$0xff] %v2297
    %2426 = vst [vmem:[#allocation2 + $0x120] sm:$0xff] %v2298
    %2427 = vst [vmem:[#allocation2 + $0x128] sm:$0xff] %v2299
    %2428 = vst [vmem:[#allocation2 + $0x130] sm:$0xff] %v2300
    %2429 = vst [vmem:[#allocation2 + $0x138] sm:$0xff] %v2301
    %2430 = vst [vmem:[#allocation2 + $0x140] sm:$0xff] %v2302
    %2431 = vst [vmem:[#allocation2 + $0x148] sm:$0xff] %v2303
    %2432 = vst [vmem:[#allocation2 + $0x150] sm:$0xff] %v2304
    %2433 = vst [vmem:[#allocation2 + $0x158] sm:$0xff] %v2305
    %2434 = vst [vmem:[#allocation2 + $0x160] sm:$0xff] %v2306
    %2435 = vst [vmem:[#allocation2 + $0x168] sm:$0xff] %v2307
    %2436 = vst [vmem:[#allocation2 + $0x170] sm:$0xff] %v2308
    %2437 = vst [vmem:[#allocation2 + $0x178] sm:$0xff] %v2309
    %2438 = vst [vmem:[#allocation2 + $0x180] sm:$0xff] %v2310
    %2439 = vst [vmem:[#allocation2 + $0x188] sm:$0xff] %v2311
    %2440 = vst [vmem:[#allocation2 + $0x190] sm:$0xff] %v2312
    %2441 = vst [vmem:[#allocation2 + $0x198] sm:$0xff] %v2313
    %2442 = vst [vmem:[#allocation2 + $0x1a0] sm:$0xff] %v2314
    %2443 = vst [vmem:[#allocation2 + $0x1a8] sm:$0xff] %v2315
    %2444 = vst [vmem:[#allocation2 + $0x1b0] sm:$0xff] %v2316
    %2445 = vst [vmem:[#allocation2 + $0x1b8] sm:$0xff] %v2317
    %2446 = vst [vmem:[#allocation2 + $0x1c0] sm:$0xff] %v2318
    %2447 = vst [vmem:[#allocation2 + $0x1c8] sm:$0xff] %v2319
    %2448 = vst [vmem:[#allocation2 + $0x1d0] sm:$0xff] %v2320
    %2449 = vst [vmem:[#allocation2 + $0x1d8] sm:$0xff] %v2321
    %2450 = vst [vmem:[#allocation2 + $0x1e0] sm:$0xff] %v2322
    %2451 = vst [vmem:[#allocation2 + $0x1e8] sm:$0xff] %v2323
    %2452 = vst [vmem:[#allocation2 + $0x1f0] sm:$0xff] %v2324
    %2453 = vst [vmem:[#allocation2 + $0x1f8] sm:$0xff] %v2325
    %2454 = vst [vmem:[#allocation2 + $0x200] sm:$0xff] %v2326
    %2455 = vst [vmem:[#allocation2 + $0x208] sm:$0xff] %v2327
    %2456 = vst [vmem:[#allocation2 + $0x210] sm:$0xff] %v2328
    %2457 = vst [vmem:[#allocation2 + $0x218] sm:$0xff] %v2329
    %2458 = vst [vmem:[#allocation2 + $0x220] sm:$0xff] %v2330
    %2459 = vst [vmem:[#allocation2 + $0x228] sm:$0xff] %v2331
    %2460 = vst [vmem:[#allocation2 + $0x230] sm:$0xff] %v2332
    %2461 = vst [vmem:[#allocation2 + $0x238] sm:$0xff] %v2333
    %2462 = vst [vmem:[#allocation2 + $0x240] sm:$0xff] %v2334
    %2463 = vst [vmem:[#allocation2 + $0x248] sm:$0xff] %v2335
    %2464 = vst [vmem:[#allocation2 + $0x250] sm:$0xff] %v2336
    %2465 = vst [vmem:[#allocation2 + $0x258] sm:$0xff] %v2337
    %2466 = vst [vmem:[#allocation2 + $0x260] sm:$0xff] %v2338
    %2467 = vst [vmem:[#allocation2 + $0x268] sm:$0xff] %v2339
    %2468 = vst [vmem:[#allocation2 + $0x270] sm:$0xff] %v2340
    %2469 = vst [vmem:[#allocation2 + $0x278] sm:$0xff] %v2341
    %2470 = vst [vmem:[#allocation2 + $0x280] sm:$0xff] %v2342
    %2471 = vst [vmem:[#allocation2 + $0x288] sm:$0xff] %v2343
    %2472 = vst [vmem:[#allocation2 + $0x290] sm:$0xff] %v2344
    %2473 = vst [vmem:[#allocation2 + $0x298] sm:$0xff] %v2345
    %2474 = vst [vmem:[#allocation2 + $0x2a0] sm:$0xff] %v2346
    %2475 = vst [vmem:[#allocation2 + $0x2a8] sm:$0xff] %v2347
    %2476 = vst [vmem:[#allocation2 + $0x2b0] sm:$0xff] %v2348
    %2477 = vst [vmem:[#allocation2 + $0x2b8] sm:$0xff] %v2349
    %2478 = vst [vmem:[#allocation2 + $0x2c0] sm:$0xff] %v2350
    %2479 = vst [vmem:[#allocation2 + $0x2c8] sm:$0xff] %v2351
    %2480 = vst [vmem:[#allocation2 + $0x2d0] sm:$0xff] %v2352
    %2481 = vst [vmem:[#allocation2 + $0x2d8] sm:$0xff] %v2353
    %2482 = vst [vmem:[#allocation2 + $0x2e0] sm:$0xff] %v2354
    %2483 = vst [vmem:[#allocation2 + $0x2e8] sm:$0xff] %v2355
    %2484 = vst [vmem:[#allocation2 + $0x2f0] sm:$0xff] %v2356
    %2485 = vst [vmem:[#allocation2 + $0x2f8] sm:$0xff] %v2357
    %2486 = vst [vmem:[#allocation2 + $0x300] sm:$0xff] %v2358
    %2487 = vst [vmem:[#allocation2 + $0x308] sm:$0xff] %v2359
    %2488 = vst [vmem:[#allocation2 + $0x310] sm:$0xff] %v2360
    %2489 = vst [vmem:[#allocation2 + $0x318] sm:$0xff] %v2361
    %2490 = vst [vmem:[#allocation2 + $0x320] sm:$0xff] %v2362
    %2491 = vst [vmem:[#allocation2 + $0x328] sm:$0xff] %v2363
    %2492 = vst [vmem:[#allocation2 + $0x330] sm:$0xff] %v2364
    %2493 = vst [vmem:[#allocation2 + $0x338] sm:$0xff] %v2365
    %2494 = vst [vmem:[#allocation2 + $0x340] sm:$0xff] %v2366
    %2495 = vst [vmem:[#allocation2 + $0x348] sm:$0xff] %v2367
    %2496 = vst [vmem:[#allocation2 + $0x350] sm:$0xff] %v2368
    %2497 = vst [vmem:[#allocation2 + $0x358] sm:$0xff] %v2369
    %2498 = vst [vmem:[#allocation2 + $0x360] sm:$0xff] %v2370
    %2499 = vst [vmem:[#allocation2 + $0x368] sm:$0xff] %v2371
    %2500 = vst [vmem:[#allocation2 + $0x370] sm:$0xff] %v2372
    %2501 = vst [vmem:[#allocation2 + $0x378] sm:$0xff] %v2373
    %2502 = vst [vmem:[#allocation2 + $0x380] sm:$0xff] %v2374
    %2503 = vst [vmem:[#allocation2 + $0x388] sm:$0xff] %v2375
    %2504 = vst [vmem:[#allocation2 + $0x390] sm:$0xff] %v2376
    %2505 = vst [vmem:[#allocation2 + $0x398] sm:$0xff] %v2377
    %2506 = vst [vmem:[#allocation2 + $0x3a0] sm:$0xff] %v2378
    %2507 = vst [vmem:[#allocation2 + $0x3a8] sm:$0xff] %v2379
    %2508 = vst [vmem:[#allocation2 + $0x3b0] sm:$0xff] %v2380
    %2509 = vst [vmem:[#allocation2 + $0x3b8] sm:$0xff] %v2381
    %2510 = vst [vmem:[#allocation2 + $0x3c0] sm:$0xff] %v2382
    %2511 = vst [vmem:[#allocation2 + $0x3c8] sm:$0xff] %v2383
    %2512 = vst [vmem:[#allocation2 + $0x3d0] sm:$0xff] %v2384
    %2513 = vst [vmem:[#allocation2 + $0x3d8] sm:$0xff] %v2385
    %2514 = vst [vmem:[#allocation2 + $0x3e0] sm:$0xff] %v2386
    %2515 = vst [vmem:[#allocation2 + $0x3e8] sm:$0xff] %v2387
    %2516 = vst [vmem:[#allocation2 + $0x3f0] sm:$0xff] %v2388
    %2517 = vst [vmem:[#allocation2 + $0x3f8] sm:$0xff] %v2389
    // Predicated region
    $region22: #{tpu_custom_call.1} parent=1 // pred_check
      _
    $region23: #{tpu_custom_call.1} parent=1 // pred_check_branch
      %2519 = sbr.rel (0) target = $region25
    $region24: #{tpu_custom_call.1} parent=1 // pred_region
      %2521 = vsyncadd [#allocation3], 0
      %s2522 = sshll.u32 [#allocation2], 4
      %s2523 = int_to_ptr.vmem [resolvable:$true] %s2522
      %s2524 = sshll.u32 %s5, 4
      %s2525 = int_to_ptr.hbm [resolvable:$true] %s2524
      %2530 = dma.vmem_to_hbm [thread:$0]  %s2523, 16384, %s2525, [#allocation3], 128, 128, 8
    $region25: #{tpu_custom_call.1} parent=1 // pred_fallthru
      _
    // Predicated region
    $region26: #{tpu_custom_call.1} parent=1 // pred_check
      _
    $region27: #{tpu_custom_call.1} parent=1 // pred_check_branch
      %2532 = sbr.rel (0) target = $region29
    $region28: #{tpu_custom_call.1} parent=1 // pred_region
      %2534 = dma.done [#allocation3], 16384
    $region29: #{tpu_custom_call.1} parent=1 // pred_fallthru
      _
    %2535 = vsyncpa [#allocation3], 1

</llo_original>
